<compile_context>
chip_gen: v7x
topology: tpu7x:2x2x1
jax: 0.10.0
libtpu: 0.0.40
codegen_flags: <defaults>
</compile_context>

<pallas_src>
import functools

import jax
import jax.numpy as jnp
from jax.experimental import pallas as pl
from jax.experimental.pallas import tpu as pltpu


def _round_up(v: int, m: int) -> int:
    return ((v + m - 1) // m) * m


def _tpu_config():
    """(mxu_align, vmem_cap_bytes, default_batch_tile) for the local TPU gen."""
    try:
        kind = jax.devices()[0].device_kind.lower()
    except Exception:  # pragma: no cover - no device info available
        kind = ""
    is_v5e = ("v5 lite" in kind) or ("v5e" in kind) or ("v5litepod" in kind)
    is_v7x = ("7x" in kind) or ("v7" in kind)
    mxu_align = 128 if is_v5e else 256          # v6e/v7x have 2x256x256 MXUs
    vmem_cap = (48 << 20) if is_v7x else (100 << 20)   # 64 MiB vs 128 MiB physical
    default_tb = 256 if is_v7x else 512
    return mxu_align, vmem_cap, default_tb


def _pad_feature(d: int, align: int) -> int:
    """Lane-dense padding: at least 128, MXU-aligned for larger dims."""
    return 128 if d <= 128 else _round_up(d, align)


def _generator_kernel(x_ref, w1_ref, b1_ref, ws_ref, bs_ref, w3_ref, b3_ref,
                      out_ref, *, g_layers: int, leaky_relu: bool):
    """One batch tile of the full Generator forward (all layers fused).

    x_ref  : (TB, Zp)   bf16
    w1_ref : (Zp, Gp)   bf16,  b1_ref : (1, Gp)  f32
    ws_ref : (g_layers, Gp, Gp) bf16,  bs_ref : (g_layers, 1, Gp) f32
    w3_ref : (Gp, Xp)   bf16,  b3_ref : (1, Xp) f32
    out_ref: (TB, Xp)
    """
    def activ(v):
        if leaky_relu:
            # F.leaky_relu default negative_slope = 0.01
            return jnp.where(v >= 0, v, 0.01 * v)
        return jnp.maximum(v, 0.0)

    # map1 + activation: bf16 MXU inputs, f32 accumulate, f32 elementwise,
    # bf16 result (the next layer's MXU operand) produced in one pass.
    h = activ(jnp.dot(x_ref[...], w1_ref[...],
                      preferred_element_type=jnp.float32)
              + b1_ref[...]).astype(jnp.bfloat16)

    # hidden maps[0 .. g_layers-2] with activation (static unroll)
    for i in range(g_layers - 1):
        h = activ(jnp.dot(h, ws_ref[i],
                          preferred_element_type=jnp.float32)
                  + bs_ref[i]).astype(jnp.bfloat16)

    # maps[g_layers-1] WITHOUT activation, then sigmoid
    h = jnp.dot(h, ws_ref[g_layers - 1],
                preferred_element_type=jnp.float32) + bs_ref[g_layers - 1]
    h = jax.nn.sigmoid(h).astype(jnp.bfloat16)

    # map3 (no final activation)
    out = jnp.dot(h, w3_ref[...],
                  preferred_element_type=jnp.float32) + b3_ref[...]
    out_ref[...] = out.astype(out_ref.dtype)


def prepare_generator_params(params, *, mxu_align=None):
    """One-time pad + bf16 cast of the weights (hoisted out of the forward)."""
    if mxu_align is None:
        mxu_align, _, _ = _tpu_config()
    w1, b1, ws, bs, w3, b3 = (params["w1"], params["b1"], params["ws"],
                              params["bs"], params["w3"], params["b3"])
    z_dim, g_dim = w1.shape
    x_dim = w3.shape[1]
    Zp = _pad_feature(z_dim, mxu_align)
    Gp = _pad_feature(g_dim, mxu_align)
    Xp = _pad_feature(x_dim, mxu_align)

    bf16 = jnp.bfloat16
    return dict(
        w1=jnp.pad(w1.astype(bf16), ((0, Zp - z_dim), (0, Gp - g_dim))),
        b1=jnp.pad(b1.astype(jnp.float32), ((0, 0), (0, Gp - g_dim))),
        ws=jnp.pad(ws.astype(bf16), ((0, 0), (0, Gp - g_dim), (0, Gp - g_dim))),
        bs=jnp.pad(bs.astype(jnp.float32), ((0, 0), (0, 0), (0, Gp - g_dim))),
        w3=jnp.pad(w3.astype(bf16), ((0, Gp - g_dim), (0, Xp - x_dim))),
        b3=jnp.pad(b3.astype(jnp.float32), ((0, 0), (0, Xp - x_dim))),
        dims=(z_dim, g_dim, x_dim),
    )


def generator_forward(x, prepared, *, g_layers: int, leaky_relu: bool = False,
                      batch_tile: int | None = None, out_dtype=jnp.float32):
    """Pad the batch, tile it over a 1-D parallel grid, call the fused kernel."""
    mxu_align, vmem_cap, default_tb = _tpu_config()
    if batch_tile is None:
        batch_tile = default_tb

    z_dim, g_dim, x_dim = prepared["dims"]
    w1p, b1p = prepared["w1"], prepared["b1"]
    wsp, bsp = prepared["ws"], prepared["bs"]
    w3p, b3p = prepared["w3"], prepared["b3"]
    Zp, Gp = w1p.shape
    Xp = w3p.shape[1]

    B = x.shape[0]
    # Even batch split: padding waste < 8 rows per tile (vs up to TB-1 before).
    n_tiles = max(1, -(-B // batch_tile))
    TB = _round_up(-(-B // n_tiles), 8)
    Bp = _round_up(B, TB)

    xp = jnp.pad(x.astype(jnp.bfloat16), ((0, Bp - B), (0, Zp - z_dim)))

    # VMEM budget (generation-aware cap).  Weights are single-buffered via
    # Buffered(1); x/out tiles are double-buffered; ~TB*Gp*6 bytes per live
    # layer intermediate (f32 accum + bf16 operand) for Mosaic's scratch.
    out_bytes = jnp.dtype(out_dtype).itemsize
    weight_bytes = (w1p.size + wsp.size + w3p.size) * 2 \
        + (b1p.size + bsp.size + b3p.size) * 4
    act_bytes = 2 * TB * Zp * 2 + 2 * TB * Xp * out_bytes + 3 * TB * Gp * 6
    vmem_limit = max(min(weight_bytes + act_bytes + (8 << 20), vmem_cap), 16 << 20)

    if weight_bytes > int(0.6 * vmem_cap):
        # TODO(synk): stream per-layer hidden weights (pltpu.emit_pipeline or a
        # manual double-buffered DMA) once the resident stack no longer fits —
        # relevant for large g_dim on v7x's 64 MiB VMEM.
        pass

    kernel = functools.partial(_generator_kernel,
                               g_layers=g_layers, leaky_relu=leaky_relu)

    def weight_spec(shape, buffered):
        # Constant index_map -> the weight stays VMEM-resident across batch
        # tiles; Buffered(1) avoids allocating a useless second buffer.
        idx_map = lambda i, _n=len(shape): (0,) * _n
        if buffered:
            return pl.BlockSpec(shape, idx_map,
                                pipeline_mode=pl.Buffered(buffer_count=1))
        return pl.BlockSpec(shape, idx_map)

    def build(buffered):
        return pl.pallas_call(
            kernel,
            out_shape=jax.ShapeDtypeStruct((Bp, Xp), out_dtype),
            grid=(Bp // TB,),
            in_specs=[
                pl.BlockSpec((TB, Zp), lambda i: (i, 0)),   # x: batch-tiled
                weight_spec(w1p.shape, buffered),
                weight_spec(b1p.shape, buffered),
                weight_spec(wsp.shape, buffered),
                weight_spec(bsp.shape, buffered),
                weight_spec(w3p.shape, buffered),
                weight_spec(b3p.shape, buffered),
            ],
            out_specs=pl.BlockSpec((TB, Xp), lambda i: (i, 0)),
            compiler_params=pltpu.CompilerParams(
                dimension_semantics=("parallel",),
                vmem_limit_bytes=int(vmem_limit)),
        )

    try:
        out = build(True)(xp, w1p, b1p, wsp, bsp, w3p, b3p)
    except Exception:
        # Fallback: default double-buffered specs if Buffered(1) is rejected
        # by this jax version (correctness is identical, only VMEM footprint).
        out = build(False)(xp, w1p, b1p, wsp, bsp, w3p, b3p)

    return out[:B, :x_dim]


def init_params(key, z_dim, g_dim, x_dim, g_layers):
    """Deterministic kaiming_normal_ weights (fan_in, gain=sqrt(2)); biases ~U."""
    ks = jax.random.split(key, 6)

    def kaiming(k, fan_in, fan_out):
        std = (2.0 / fan_in) ** 0.5
        return jax.random.normal(k, (fan_in, fan_out), jnp.float32) * std

    def bias(k, fan_in, fan_out):
        bound = 1.0 / (fan_in ** 0.5)
        return jax.random.uniform(k, (1, fan_out), jnp.float32, -bound, bound)

    w1 = kaiming(ks[0], z_dim, g_dim)
    b1 = bias(ks[1], z_dim, g_dim)

    kw = jax.random.split(ks[2], g_layers)
    kb = jax.random.split(ks[3], g_layers)
    ws = jnp.stack([kaiming(kw[i], g_dim, g_dim) for i in range(g_layers)])
    bs = jnp.stack([bias(kb[i], g_dim, g_dim) for i in range(g_layers)])

    w3 = kaiming(ks[4], g_dim, x_dim)
    b3 = bias(ks[5], g_dim, x_dim)
    return dict(w1=w1, b1=b1, ws=ws, bs=bs, w3=w3, b3=b3)


def _reference_forward(x, p, g_layers, leaky_relu=False):
    """Pure-JAX f32 reference for a sanity check."""
    act = (lambda v: jnp.where(v >= 0, v, 0.01 * v)) if leaky_relu \
        else (lambda v: jnp.maximum(v, 0.0))
    h = act(x @ p["w1"] + p["b1"])
    for i in range(g_layers - 1):
        h = act(h @ p["ws"][i] + p["bs"][i])
    h = h @ p["ws"][g_layers - 1] + p["bs"][g_layers - 1]
    h = jax.nn.sigmoid(h)
    return h @ p["w3"] + p["b3"]


if __name__ == "__main__":
    # Small shapes consistent with the module's forward (pure MLP on vectors).
    B, Z_DIM, G_DIM, X_DIM, G_LAYERS = 8, 16, 32, 8, 3

    key = jax.random.PRNGKey(0)
    k_param, k_x = jax.random.split(key)
    params = init_params(k_param, Z_DIM, G_DIM, X_DIM, G_LAYERS)
    x = jax.random.normal(k_x, (B, Z_DIM), jnp.float32)

    # One-time weight pad + bf16 cast (hoisted out of the per-call wrapper).
    prepared = prepare_generator_params(params)

    for leaky in (False, True):
        out = generator_forward(x, prepared, g_layers=G_LAYERS, leaky_relu=leaky)
        out = jax.block_until_ready(out)
        ref = _reference_forward(x, params, G_LAYERS, leaky_relu=leaky)
        assert out.shape == (B, X_DIM)
        # bf16 matmul inputs (f32 accumulate) vs f32 reference -> loose tolerance.
        assert jnp.allclose(out, ref, atol=3e-2, rtol=3e-2), \
            f"mismatch vs reference (leaky_relu={leaky})"

    print("KERNEL_OK")
</pallas_src>

<mosaic_0001>
module attributes {stable_mosaic.version = 11 : i64} {
  func.func @_generator_kernel(%arg0: i32, %arg1: memref<8x128xbf16, #tpu.memory_space<vmem>>, %arg2: memref<128x128xbf16, #tpu.memory_space<vmem>>, %arg3: memref<1x128xf32, #tpu.memory_space<vmem>>, %arg4: memref<3x128x128xbf16, #tpu.memory_space<vmem>>, %arg5: memref<3x1x128xf32, #tpu.memory_space<vmem>>, %arg6: memref<128x128xbf16, #tpu.memory_space<vmem>>, %arg7: memref<1x128xf32, #tpu.memory_space<vmem>>, %arg8: memref<8x128xf32, #tpu.memory_space<vmem>>) attributes {dimension_semantics = [#tpu.dimension_semantics<parallel>], iteration_bounds = array<i64: 1>, scalar_prefetch = 0 : i64, scratch_operands = 0 : i64, tpu.core_type = #tpu.core_type<tc>, window_params = [{transform_indices = @transform_0, window_bounds = array<i64: 8, 128>}, {pipeline_mode = #tpu.pipeline_mode<synchronous>, transform_indices = @transform_1, window_bounds = array<i64: 128, 128>}, {pipeline_mode = #tpu.pipeline_mode<synchronous>, transform_indices = @transform_2, window_bounds = array<i64: 1, 128>}, {pipeline_mode = #tpu.pipeline_mode<synchronous>, transform_indices = @transform_3, window_bounds = array<i64: 3, 128, 128>}, {pipeline_mode = #tpu.pipeline_mode<synchronous>, transform_indices = @transform_4, window_bounds = array<i64: 3, 1, 128>}, {pipeline_mode = #tpu.pipeline_mode<synchronous>, transform_indices = @transform_5, window_bounds = array<i64: 128, 128>}, {pipeline_mode = #tpu.pipeline_mode<synchronous>, transform_indices = @transform_6, window_bounds = array<i64: 1, 128>}, {transform_indices = @transform_7, window_bounds = array<i64: 8, 128>}]} {
    %c0 = arith.constant 0 : index
    %c0_0 = arith.constant 0 : index
    %0 = vector.load %arg1[%c0, %c0_0] : memref<8x128xbf16, #tpu.memory_space<vmem>>, vector<8x128xbf16>
    %c0_1 = arith.constant 0 : index
    %c0_2 = arith.constant 0 : index
    %1 = vector.load %arg2[%c0_1, %c0_2] : memref<128x128xbf16, #tpu.memory_space<vmem>>, vector<128x128xbf16>
    %cst = arith.constant dense<0.000000e+00> : vector<8x128xf32>
    %2 = tpu.matmul %0, %1, %cst {dimension_numbers = #tpu.dot_dimension_numbers<[1], [0], [0], [1], [0, 0, 1, 1], [], []>} : vector<8x128xbf16>, vector<128x128xbf16>, vector<8x128xf32> -> vector<8x128xf32>
    %c0_3 = arith.constant 0 : index
    %c0_4 = arith.constant 0 : index
    %3 = vector.load %arg3[%c0_3, %c0_4] : memref<1x128xf32, #tpu.memory_space<vmem>>, vector<1x128xf32>
    %4 = vector.broadcast %3 : vector<1x128xf32> to vector<8x128xf32>
    %5 = arith.addf %2, %4 : vector<8x128xf32>
    %cst_5 = arith.constant 0.000000e+00 : f32
    %6 = vector.broadcast %cst_5 : f32 to vector<8x128xf32>
    %7 = arith.maximumf %5, %6 : vector<8x128xf32>
    %8 = arith.truncf %7 : vector<8x128xf32> to vector<8x128xbf16>
    %c0_6 = arith.constant 0 : index
    %c0_7 = arith.constant 0 : index
    %c0_8 = arith.constant 0 : index
    %9 = vector.load %arg4[%c0_6, %c0_7, %c0_8] : memref<3x128x128xbf16, #tpu.memory_space<vmem>>, vector<1x128x128xbf16>
    %10 = vector.shape_cast %9 : vector<1x128x128xbf16> to vector<128x128xbf16>
    %cst_9 = arith.constant dense<0.000000e+00> : vector<8x128xf32>
    %11 = tpu.matmul %8, %10, %cst_9 {dimension_numbers = #tpu.dot_dimension_numbers<[1], [0], [0], [1], [0, 0, 1, 1], [], []>} : vector<8x128xbf16>, vector<128x128xbf16>, vector<8x128xf32> -> vector<8x128xf32>
    %c0_10 = arith.constant 0 : index
    %c0_11 = arith.constant 0 : index
    %c0_12 = arith.constant 0 : index
    %12 = vector.load %arg5[%c0_10, %c0_11, %c0_12] : memref<3x1x128xf32, #tpu.memory_space<vmem>>, vector<1x1x128xf32>
    %13 = vector.shape_cast %12 : vector<1x1x128xf32> to vector<1x128xf32>
    %14 = vector.broadcast %13 : vector<1x128xf32> to vector<8x128xf32>
    %15 = arith.addf %11, %14 : vector<8x128xf32>
    %cst_13 = arith.constant 0.000000e+00 : f32
    %16 = vector.broadcast %cst_13 : f32 to vector<8x128xf32>
    %17 = arith.maximumf %15, %16 : vector<8x128xf32>
    %18 = arith.truncf %17 : vector<8x128xf32> to vector<8x128xbf16>
    %c1 = arith.constant 1 : index
    %c0_14 = arith.constant 0 : index
    %c0_15 = arith.constant 0 : index
    %19 = vector.load %arg4[%c1, %c0_14, %c0_15] : memref<3x128x128xbf16, #tpu.memory_space<vmem>>, vector<1x128x128xbf16>
    %20 = vector.shape_cast %19 : vector<1x128x128xbf16> to vector<128x128xbf16>
    %cst_16 = arith.constant dense<0.000000e+00> : vector<8x128xf32>
    %21 = tpu.matmul %18, %20, %cst_16 {dimension_numbers = #tpu.dot_dimension_numbers<[1], [0], [0], [1], [0, 0, 1, 1], [], []>} : vector<8x128xbf16>, vector<128x128xbf16>, vector<8x128xf32> -> vector<8x128xf32>
    %c1_17 = arith.constant 1 : index
    %c0_18 = arith.constant 0 : index
    %c0_19 = arith.constant 0 : index
    %22 = vector.load %arg5[%c1_17, %c0_18, %c0_19] : memref<3x1x128xf32, #tpu.memory_space<vmem>>, vector<1x1x128xf32>
    %23 = vector.shape_cast %22 : vector<1x1x128xf32> to vector<1x128xf32>
    %24 = vector.broadcast %23 : vector<1x128xf32> to vector<8x128xf32>
    %25 = arith.addf %21, %24 : vector<8x128xf32>
    %cst_20 = arith.constant 0.000000e+00 : f32
    %26 = vector.broadcast %cst_20 : f32 to vector<8x128xf32>
    %27 = arith.maximumf %25, %26 : vector<8x128xf32>
    %28 = arith.truncf %27 : vector<8x128xf32> to vector<8x128xbf16>
    %c2 = arith.constant 2 : index
    %c0_21 = arith.constant 0 : index
    %c0_22 = arith.constant 0 : index
    %29 = vector.load %arg4[%c2, %c0_21, %c0_22] : memref<3x128x128xbf16, #tpu.memory_space<vmem>>, vector<1x128x128xbf16>
    %30 = vector.shape_cast %29 : vector<1x128x128xbf16> to vector<128x128xbf16>
    %cst_23 = arith.constant dense<0.000000e+00> : vector<8x128xf32>
    %31 = tpu.matmul %28, %30, %cst_23 {dimension_numbers = #tpu.dot_dimension_numbers<[1], [0], [0], [1], [0, 0, 1, 1], [], []>} : vector<8x128xbf16>, vector<128x128xbf16>, vector<8x128xf32> -> vector<8x128xf32>
    %c2_24 = arith.constant 2 : index
    %c0_25 = arith.constant 0 : index
    %c0_26 = arith.constant 0 : index
    %32 = vector.load %arg5[%c2_24, %c0_25, %c0_26] : memref<3x1x128xf32, #tpu.memory_space<vmem>>, vector<1x1x128xf32>
    %33 = vector.shape_cast %32 : vector<1x1x128xf32> to vector<1x128xf32>
    %34 = vector.broadcast %33 : vector<1x128xf32> to vector<8x128xf32>
    %35 = arith.addf %31, %34 : vector<8x128xf32>
    %36 = arith.negf %35 : vector<8x128xf32>
    %37 = math.exp %36 : vector<8x128xf32>
    %cst_27 = arith.constant 1.000000e+00 : f32
    %38 = vector.broadcast %cst_27 : f32 to vector<8x128xf32>
    %39 = arith.addf %38, %37 : vector<8x128xf32>
    %40 = arith.divf %38, %39 : vector<8x128xf32>
    %41 = arith.truncf %40 : vector<8x128xf32> to vector<8x128xbf16>
    %c0_28 = arith.constant 0 : index
    %c0_29 = arith.constant 0 : index
    %42 = vector.load %arg6[%c0_28, %c0_29] : memref<128x128xbf16, #tpu.memory_space<vmem>>, vector<128x128xbf16>
    %cst_30 = arith.constant dense<0.000000e+00> : vector<8x128xf32>
    %43 = tpu.matmul %41, %42, %cst_30 {dimension_numbers = #tpu.dot_dimension_numbers<[1], [0], [0], [1], [0, 0, 1, 1], [], []>} : vector<8x128xbf16>, vector<128x128xbf16>, vector<8x128xf32> -> vector<8x128xf32>
    %c0_31 = arith.constant 0 : index
    %c0_32 = arith.constant 0 : index
    %44 = vector.load %arg7[%c0_31, %c0_32] : memref<1x128xf32, #tpu.memory_space<vmem>>, vector<1x128xf32>
    %45 = vector.broadcast %44 : vector<1x128xf32> to vector<8x128xf32>
    %46 = arith.addf %43, %45 : vector<8x128xf32>
    %c0_33 = arith.constant 0 : index
    %c0_34 = arith.constant 0 : index
    %47 = vector.load %arg8[%c0_33, %c0_34] : memref<8x128xf32, #tpu.memory_space<vmem>>, vector<8x128xf32>
    tpu.vector_store %arg8[%c0_33, %c0_34], %46 {strides = array<i32>} : memref<8x128xf32, #tpu.memory_space<vmem>>, vector<8x128xf32>,
    return
  }
  func.func @transform_0(%arg0: i32) -> (i32, i32) {
    %c0_i32 = arith.constant 0 : i32
    %c0_i32_0 = arith.constant 0 : i32
    return %arg0, %c0_i32 : i32, i32
  }
  func.func @transform_1(%arg0: i32) -> (i32, i32) {
    %c0_i32 = arith.constant 0 : i32
    %c0_i32_0 = arith.constant 0 : i32
    %c0_i32_1 = arith.constant 0 : i32
    return %c0_i32, %c0_i32_0 : i32, i32
  }
  func.func @transform_2(%arg0: i32) -> (i32, i32) {
    %c0_i32 = arith.constant 0 : i32
    %c0_i32_0 = arith.constant 0 : i32
    %c0_i32_1 = arith.constant 0 : i32
    return %c0_i32, %c0_i32_0 : i32, i32
  }
  func.func @transform_3(%arg0: i32) -> (i32, i32, i32) {
    %c0_i32 = arith.constant 0 : i32
    %c0_i32_0 = arith.constant 0 : i32
    %c0_i32_1 = arith.constant 0 : i32
    %c0_i32_2 = arith.constant 0 : i32
    return %c0_i32, %c0_i32_0, %c0_i32_1 : i32, i32, i32
  }
  func.func @transform_4(%arg0: i32) -> (i32, i32, i32) {
    %c0_i32 = arith.constant 0 : i32
    %c0_i32_0 = arith.constant 0 : i32
    %c0_i32_1 = arith.constant 0 : i32
    %c0_i32_2 = arith.constant 0 : i32
    return %c0_i32, %c0_i32_0, %c0_i32_1 : i32, i32, i32
  }
  func.func @transform_5(%arg0: i32) -> (i32, i32) {
    %c0_i32 = arith.constant 0 : i32
    %c0_i32_0 = arith.constant 0 : i32
    %c0_i32_1 = arith.constant 0 : i32
    return %c0_i32, %c0_i32_0 : i32, i32
  }
  func.func @transform_6(%arg0: i32) -> (i32, i32) {
    %c0_i32 = arith.constant 0 : i32
    %c0_i32_0 = arith.constant 0 : i32
    %c0_i32_1 = arith.constant 0 : i32
    return %c0_i32, %c0_i32_0 : i32, i32
  }
  func.func @transform_7(%arg0: i32) -> (i32, i32) {
    %c0_i32 = arith.constant 0 : i32
    %c0_i32_0 = arith.constant 0 : i32
    return %arg0, %c0_i32 : i32, i32
  }
}

module attributes {stable_mosaic.version = 11 : i64} {
  func.func @_generator_kernel(%arg0: i32, %arg1: memref<8x128xbf16, #tpu.memory_space<vmem>>, %arg2: memref<128x128xbf16, #tpu.memory_space<vmem>>, %arg3: memref<1x128xf32, #tpu.memory_space<vmem>>, %arg4: memref<3x128x128xbf16, #tpu.memory_space<vmem>>, %arg5: memref<3x1x128xf32, #tpu.memory_space<vmem>>, %arg6: memref<128x128xbf16, #tpu.memory_space<vmem>>, %arg7: memref<1x128xf32, #tpu.memory_space<vmem>>, %arg8: memref<8x128xf32, #tpu.memory_space<vmem>>) attributes {dimension_semantics = [#tpu.dimension_semantics<parallel>], iteration_bounds = array<i64: 1>, scalar_prefetch = 0 : i64, scratch_operands = 0 : i64, tpu.core_type = #tpu.core_type<tc>, window_params = [{transform_indices = @transform_0, window_bounds = array<i64: 8, 128>}, {pipeline_mode = #tpu.pipeline_mode<synchronous>, transform_indices = @transform_1, window_bounds = array<i64: 128, 128>}, {pipeline_mode = #tpu.pipeline_mode<synchronous>, transform_indices = @transform_2, window_bounds = array<i64: 1, 128>}, {pipeline_mode = #tpu.pipeline_mode<synchronous>, transform_indices = @transform_3, window_bounds = array<i64: 3, 128, 128>}, {pipeline_mode = #tpu.pipeline_mode<synchronous>, transform_indices = @transform_4, window_bounds = array<i64: 3, 1, 128>}, {pipeline_mode = #tpu.pipeline_mode<synchronous>, transform_indices = @transform_5, window_bounds = array<i64: 128, 128>}, {pipeline_mode = #tpu.pipeline_mode<synchronous>, transform_indices = @transform_6, window_bounds = array<i64: 1, 128>}, {transform_indices = @transform_7, window_bounds = array<i64: 8, 128>}]} {
    %c0 = arith.constant 0 : index
    %c0_0 = arith.constant 0 : index
    %0 = vector.load %arg1[%c0, %c0_0] : memref<8x128xbf16, #tpu.memory_space<vmem>>, vector<8x128xbf16>
    %c0_1 = arith.constant 0 : index
    %c0_2 = arith.constant 0 : index
    %1 = vector.load %arg2[%c0_1, %c0_2] : memref<128x128xbf16, #tpu.memory_space<vmem>>, vector<128x128xbf16>
    %cst = arith.constant dense<0.000000e+00> : vector<8x128xf32>
    %2 = tpu.matmul %0, %1, %cst {dimension_numbers = #tpu.dot_dimension_numbers<[1], [0], [0], [1], [0, 0, 1, 1], [], []>} : vector<8x128xbf16>, vector<128x128xbf16>, vector<8x128xf32> -> vector<8x128xf32>
    %c0_3 = arith.constant 0 : index
    %c0_4 = arith.constant 0 : index
    %3 = vector.load %arg3[%c0_3, %c0_4] : memref<1x128xf32, #tpu.memory_space<vmem>>, vector<1x128xf32>
    %4 = vector.broadcast %3 : vector<1x128xf32> to vector<8x128xf32>
    %5 = arith.addf %2, %4 : vector<8x128xf32>
    %cst_5 = arith.constant 0.000000e+00 : f32
    %6 = vector.broadcast %cst_5 : f32 to vector<8x128xf32>
    %7 = arith.maximumf %5, %6 : vector<8x128xf32>
    %8 = arith.truncf %7 : vector<8x128xf32> to vector<8x128xbf16>
    %c0_6 = arith.constant 0 : index
    %c0_7 = arith.constant 0 : index
    %c0_8 = arith.constant 0 : index
    %9 = vector.load %arg4[%c0_6, %c0_7, %c0_8] : memref<3x128x128xbf16, #tpu.memory_space<vmem>>, vector<1x128x128xbf16>
    %10 = vector.shape_cast %9 : vector<1x128x128xbf16> to vector<128x128xbf16>
    %cst_9 = arith.constant dense<0.000000e+00> : vector<8x128xf32>
    %11 = tpu.matmul %8, %10, %cst_9 {dimension_numbers = #tpu.dot_dimension_numbers<[1], [0], [0], [1], [0, 0, 1, 1], [], []>} : vector<8x128xbf16>, vector<128x128xbf16>, vector<8x128xf32> -> vector<8x128xf32>
    %c0_10 = arith.constant 0 : index
    %c0_11 = arith.constant 0 : index
    %c0_12 = arith.constant 0 : index
    %12 = vector.load %arg5[%c0_10, %c0_11, %c0_12] : memref<3x1x128xf32, #tpu.memory_space<vmem>>, vector<1x1x128xf32>
    %13 = vector.shape_cast %12 : vector<1x1x128xf32> to vector<1x128xf32>
    %14 = vector.broadcast %13 : vector<1x128xf32> to vector<8x128xf32>
    %15 = arith.addf %11, %14 : vector<8x128xf32>
    %cst_13 = arith.constant 0.000000e+00 : f32
    %16 = vector.broadcast %cst_13 : f32 to vector<8x128xf32>
    %17 = arith.maximumf %15, %16 : vector<8x128xf32>
    %18 = arith.truncf %17 : vector<8x128xf32> to vector<8x128xbf16>
    %c1 = arith.constant 1 : index
    %c0_14 = arith.constant 0 : index
    %c0_15 = arith.constant 0 : index
    %19 = vector.load %arg4[%c1, %c0_14, %c0_15] : memref<3x128x128xbf16, #tpu.memory_space<vmem>>, vector<1x128x128xbf16>
    %20 = vector.shape_cast %19 : vector<1x128x128xbf16> to vector<128x128xbf16>
    %cst_16 = arith.constant dense<0.000000e+00> : vector<8x128xf32>
    %21 = tpu.matmul %18, %20, %cst_16 {dimension_numbers = #tpu.dot_dimension_numbers<[1], [0], [0], [1], [0, 0, 1, 1], [], []>} : vector<8x128xbf16>, vector<128x128xbf16>, vector<8x128xf32> -> vector<8x128xf32>
    %c1_17 = arith.constant 1 : index
    %c0_18 = arith.constant 0 : index
    %c0_19 = arith.constant 0 : index
    %22 = vector.load %arg5[%c1_17, %c0_18, %c0_19] : memref<3x1x128xf32, #tpu.memory_space<vmem>>, vector<1x1x128xf32>
    %23 = vector.shape_cast %22 : vector<1x1x128xf32> to vector<1x128xf32>
    %24 = vector.broadcast %23 : vector<1x128xf32> to vector<8x128xf32>
    %25 = arith.addf %21, %24 : vector<8x128xf32>
    %cst_20 = arith.constant 0.000000e+00 : f32
    %26 = vector.broadcast %cst_20 : f32 to vector<8x128xf32>
    %27 = arith.maximumf %25, %26 : vector<8x128xf32>
    %28 = arith.truncf %27 : vector<8x128xf32> to vector<8x128xbf16>
    %c2 = arith.constant 2 : index
    %c0_21 = arith.constant 0 : index
    %c0_22 = arith.constant 0 : index
    %29 = vector.load %arg4[%c2, %c0_21, %c0_22] : memref<3x128x128xbf16, #tpu.memory_space<vmem>>, vector<1x128x128xbf16>
    %30 = vector.shape_cast %29 : vector<1x128x128xbf16> to vector<128x128xbf16>
    %cst_23 = arith.constant dense<0.000000e+00> : vector<8x128xf32>
    %31 = tpu.matmul %28, %30, %cst_23 {dimension_numbers = #tpu.dot_dimension_numbers<[1], [0], [0], [1], [0, 0, 1, 1], [], []>} : vector<8x128xbf16>, vector<128x128xbf16>, vector<8x128xf32> -> vector<8x128xf32>
    %c2_24 = arith.constant 2 : index
    %c0_25 = arith.constant 0 : index
    %c0_26 = arith.constant 0 : index
    %32 = vector.load %arg5[%c2_24, %c0_25, %c0_26] : memref<3x1x128xf32, #tpu.memory_space<vmem>>, vector<1x1x128xf32>
    %33 = vector.shape_cast %32 : vector<1x1x128xf32> to vector<1x128xf32>
    %34 = vector.broadcast %33 : vector<1x128xf32> to vector<8x128xf32>
    %35 = arith.addf %31, %34 : vector<8x128xf32>
    %36 = arith.negf %35 : vector<8x128xf32>
    %37 = math.exp %36 : vector<8x128xf32>
    %cst_27 = arith.constant 1.000000e+00 : f32
    %38 = vector.broadcast %cst_27 : f32 to vector<8x128xf32>
    %39 = arith.addf %38, %37 : vector<8x128xf32>
    %40 = arith.divf %38, %39 : vector<8x128xf32>
    %41 = arith.truncf %40 : vector<8x128xf32> to vector<8x128xbf16>
    %c0_28 = arith.constant 0 : index
    %c0_29 = arith.constant 0 : index
    %42 = vector.load %arg6[%c0_28, %c0_29] : memref<128x128xbf16, #tpu.memory_space<vmem>>, vector<128x128xbf16>
    %cst_30 = arith.constant dense<0.000000e+00> : vector<8x128xf32>
    %43 = tpu.matmul %41, %42, %cst_30 {dimension_numbers = #tpu.dot_dimension_numbers<[1], [0], [0], [1], [0, 0, 1, 1], [], []>} : vector<8x128xbf16>, vector<128x128xbf16>, vector<8x128xf32> -> vector<8x128xf32>
    %c0_31 = arith.constant 0 : index
    %c0_32 = arith.constant 0 : index
    %44 = vector.load %arg7[%c0_31, %c0_32] : memref<1x128xf32, #tpu.memory_space<vmem>>, vector<1x128xf32>
    %45 = vector.broadcast %44 : vector<1x128xf32> to vector<8x128xf32>
    %46 = arith.addf %43, %45 : vector<8x128xf32>
    %c0_33 = arith.constant 0 : index
    %c0_34 = arith.constant 0 : index
    %47 = vector.load %arg8[%c0_33, %c0_34] : memref<8x128xf32, #tpu.memory_space<vmem>>, vector<8x128xf32>
    tpu.vector_store %arg8[%c0_33, %c0_34], %46 {strides = array<i32>} : memref<8x128xf32, #tpu.memory_space<vmem>>, vector<8x128xf32>,
    return
  }
  func.func @transform_0(%arg0: i32) -> (i32, i32) {
    %c0_i32 = arith.constant 0 : i32
    %c0_i32_0 = arith.constant 0 : i32
    return %arg0, %c0_i32 : i32, i32
  }
  func.func @transform_1(%arg0: i32) -> (i32, i32) {
    %c0_i32 = arith.constant 0 : i32
    %c0_i32_0 = arith.constant 0 : i32
    %c0_i32_1 = arith.constant 0 : i32
    return %c0_i32, %c0_i32_0 : i32, i32
  }
  func.func @transform_2(%arg0: i32) -> (i32, i32) {
    %c0_i32 = arith.constant 0 : i32
    %c0_i32_0 = arith.constant 0 : i32
    %c0_i32_1 = arith.constant 0 : i32
    return %c0_i32, %c0_i32_0 : i32, i32
  }
  func.func @transform_3(%arg0: i32) -> (i32, i32, i32) {
    %c0_i32 = arith.constant 0 : i32
    %c0_i32_0 = arith.constant 0 : i32
    %c0_i32_1 = arith.constant 0 : i32
    %c0_i32_2 = arith.constant 0 : i32
    return %c0_i32, %c0_i32_0, %c0_i32_1 : i32, i32, i32
  }
  func.func @transform_4(%arg0: i32) -> (i32, i32, i32) {
    %c0_i32 = arith.constant 0 : i32
    %c0_i32_0 = arith.constant 0 : i32
    %c0_i32_1 = arith.constant 0 : i32
    %c0_i32_2 = arith.constant 0 : i32
    return %c0_i32, %c0_i32_0, %c0_i32_1 : i32, i32, i32
  }
  func.func @transform_5(%arg0: i32) -> (i32, i32) {
    %c0_i32 = arith.constant 0 : i32
    %c0_i32_0 = arith.constant 0 : i32
    %c0_i32_1 = arith.constant 0 : i32
    return %c0_i32, %c0_i32_0 : i32, i32
  }
  func.func @transform_6(%arg0: i32) -> (i32, i32) {
    %c0_i32 = arith.constant 0 : i32
    %c0_i32_0 = arith.constant 0 : i32
    %c0_i32_1 = arith.constant 0 : i32
    return %c0_i32, %c0_i32_0 : i32, i32
  }
  func.func @transform_7(%arg0: i32) -> (i32, i32) {
    %c0_i32 = arith.constant 0 : i32
    %c0_i32_0 = arith.constant 0 : i32
    return %arg0, %c0_i32 : i32, i32
  }
}

</mosaic_0001>

<llo_original>
// kernel: tpu_custom_call.1
$region0: #{tpu_custom_call.1}
  #allocation0 [shape = 'u32[]', space=smem, size = 0x4, offset = 0x4, fixed_abs, tag = 'smem constant byte address 0x4 - core index']
  #allocation1 [shape = 'u32[144,128]{1,0:T(1,128)}', space=vmem, size = 0x12000, scoped, tag = 'internal scratch']
  %s0 = inlined_call_operand.hbm [shape: bf16[8,128], index: 0, kind: input, shape index: {}]
  %s1 = inlined_call_operand.hbm [shape: bf16[128,128], index: 1, kind: input, shape index: {}]
  %s2 = inlined_call_operand.vmem [shape: f32[1,128], index: 2, kind: input, shape index: {}]
  %s3 = inlined_call_operand.hbm [shape: bf16[3,128,128], index: 3, kind: input, shape index: {}]
  %s4 = inlined_call_operand.vmem [shape: f32[3,1,128], index: 4, kind: input, shape index: {}]
  %s5 = inlined_call_operand.hbm [shape: bf16[128,128], index: 5, kind: input, shape index: {}]
  %s6 = inlined_call_operand.vmem [shape: f32[1,128], index: 6, kind: input, shape index: {}]
  %s7 = inlined_call_operand.hbm [shape: f32[8,128], index: 7, kind: output, shape index: {}]
  %s8 = sld [smem:[#allocation0]]
  $region54: #{tpu_custom_call.1} parent=0
    _
  %s10 = ssub.s32 1, %s8
  %s11 = scalar_select 0, %s10, %s8
  $region1: #{tpu_custom_call.1} parent=0
    #allocation2 [shape = 'u8[2048]{0}', space=vmem, size = 0x800, scoped, tag = 'input window, operand 0, single buffered']
    #allocation3 [shape = 's32[1]{0}', space=sflag, size = 0x4, scoped, tag = 'scoped memory for tpu_custom_call.1']
    #allocation4 [shape = 's32[1]{0}', space=sflag, size = 0x4, scoped, tag = 'scoped memory for tpu_custom_call.1']
    #allocation5 [shape = 'u8[32768]{0}', space=vmem, size = 0x8000, scoped, tag = 'input window, operand 1, single buffered']
    #allocation6 [shape = 's32[1]{0}', space=sflag, size = 0x4, scoped, tag = 'scoped memory for tpu_custom_call.1']
    #allocation7 [shape = 'u8[98304]{0}', space=vmem, size = 0x18000, scoped, tag = 'input window, operand 3, single buffered']
    #allocation8 [shape = 'u8[32768]{0}', space=vmem, size = 0x8000, scoped, tag = 'input window, operand 5, single buffered']
    #allocation9 [shape = 's32[1]{0}', space=sflag, size = 0x4, scoped, tag = 'scoped memory for tpu_custom_call.1']
    #allocation10 [shape = 'u8[4096]{0}', space=vmem, size = 0x1000, scoped, tag = 'output window, operand 0, single buffered']
    %12 = vsyncpa [#allocation3], 0
    %13 = vsyncpa [#allocation6], 0
    %14 = vsyncpa [#allocation9], 0
    %15 = vsyncpa [#allocation4], 0
    // Predicated region
    $region2: #{tpu_custom_call.1} parent=1 // pred_check
      _
    $region3: #{tpu_custom_call.1} parent=1 // pred_check_branch
      %17 = sbr.rel (0) target = $region5
    $region4: #{tpu_custom_call.1} parent=1 // pred_region
      %s19 = ssub.s32 64, 64
      %20 = vsyncadd [#allocation3], %s19
      %s22 = sshll.u32 [#allocation2], 4
      %s23 = int_to_ptr.vmem [resolvable:$true] %s22
      %25 = dma.hbm_to_vmem [thread:$0]  %s0, 64, %s23, [#allocation3]
    $region5: #{tpu_custom_call.1} parent=1 // pred_fallthru
      _
    // Predicated region
    $region6: #{tpu_custom_call.1} parent=1 // pred_check
      _
    $region7: #{tpu_custom_call.1} parent=1 // pred_check_branch
      %27 = sbr.rel (0) target = $region9
    $region8: #{tpu_custom_call.1} parent=1 // pred_region
      %s29 = ssub.s32 1024, 1024
      %30 = vsyncadd [#allocation6], %s29
      %s31 = sshll.u32 [#allocation5], 4
      %s32 = int_to_ptr.vmem [resolvable:$true] %s31
      %37 = dma.hbm_to_vmem [thread:$0]  %s1, 1024, %s32, [#allocation6], 64, 64, 4
    $region9: #{tpu_custom_call.1} parent=1 // pred_fallthru
      _
    // Predicated region
    $region10: #{tpu_custom_call.1} parent=1 // pred_check
      _
    $region11: #{tpu_custom_call.1} parent=1 // pred_check_branch
      %39 = sbr.rel (0) target = $region13
    $region12: #{tpu_custom_call.1} parent=1 // pred_region
      _
    $region13: #{tpu_custom_call.1} parent=1 // pred_fallthru
      _
    // Predicated region
    $region14: #{tpu_custom_call.1} parent=1 // pred_check
      _
    $region15: #{tpu_custom_call.1} parent=1 // pred_check_branch
      %41 = sbr.rel (0) target = $region17
    $region16: #{tpu_custom_call.1} parent=1 // pred_region
      %s43 = ssub.s32 3072, 3072
      %44 = vsyncadd [#allocation6], %s43
      %s45 = sshll.u32 [#allocation7], 4
      %s46 = int_to_ptr.vmem [resolvable:$true] %s45
      %51 = dma.hbm_to_vmem [thread:$0]  %s3, 3072, %s46, [#allocation6], 64, 64, 4
    $region17: #{tpu_custom_call.1} parent=1 // pred_fallthru
      _
    // Predicated region
    $region18: #{tpu_custom_call.1} parent=1 // pred_check
      _
    $region19: #{tpu_custom_call.1} parent=1 // pred_check_branch
      %53 = sbr.rel (0) target = $region21
    $region20: #{tpu_custom_call.1} parent=1 // pred_region
      _
    $region21: #{tpu_custom_call.1} parent=1 // pred_fallthru
      _
    // Predicated region
    $region22: #{tpu_custom_call.1} parent=1 // pred_check
      _
    $region23: #{tpu_custom_call.1} parent=1 // pred_check_branch
      %55 = sbr.rel (0) target = $region25
    $region24: #{tpu_custom_call.1} parent=1 // pred_region
      %s57 = ssub.s32 1024, 1024
      %58 = vsyncadd [#allocation9], %s57
      %s59 = sshll.u32 [#allocation8], 4
      %s60 = int_to_ptr.vmem [resolvable:$true] %s59
      %65 = dma.hbm_to_vmem [thread:$0]  %s5, 1024, %s60, [#allocation9], 64, 64, 4
    $region25: #{tpu_custom_call.1} parent=1 // pred_fallthru
      _
    // Predicated region
    $region26: #{tpu_custom_call.1} parent=1 // pred_check
      _
    $region27: #{tpu_custom_call.1} parent=1 // pred_check_branch
      %67 = sbr.rel (0) target = $region29
    $region28: #{tpu_custom_call.1} parent=1 // pred_region
      _
    $region29: #{tpu_custom_call.1} parent=1 // pred_fallthru
      _
    // Predicated region
    $region30: #{tpu_custom_call.1} parent=1 // pred_check
      _
    $region31: #{tpu_custom_call.1} parent=1 // pred_check_branch
      %69 = sbr.rel (0) target = $region33
    $region32: #{tpu_custom_call.1} parent=1 // pred_region
      %70 = dma.done [#allocation3], 64
    $region33: #{tpu_custom_call.1} parent=1 // pred_fallthru
      _
    // Predicated region
    $region34: #{tpu_custom_call.1} parent=1 // pred_check
      _
    $region35: #{tpu_custom_call.1} parent=1 // pred_check_branch
      %72 = sbr.rel (0) target = $region37
    $region36: #{tpu_custom_call.1} parent=1 // pred_region
      %73 = dma.done [#allocation6], 1024
    $region37: #{tpu_custom_call.1} parent=1 // pred_fallthru
      _
    // Predicated region
    $region38: #{tpu_custom_call.1} parent=1 // pred_check
      _
    $region39: #{tpu_custom_call.1} parent=1 // pred_check_branch
      %75 = sbr.rel (0) target = $region41
    $region40: #{tpu_custom_call.1} parent=1 // pred_region
      %76 = dma.done [#allocation6], 3072
    $region41: #{tpu_custom_call.1} parent=1 // pred_fallthru
      _
    // Predicated region
    $region42: #{tpu_custom_call.1} parent=1 // pred_check
      _
    $region43: #{tpu_custom_call.1} parent=1 // pred_check_branch
      %78 = sbr.rel (0) target = $region45
    $region44: #{tpu_custom_call.1} parent=1 // pred_region
      %79 = dma.done [#allocation9], 1024
    $region45: #{tpu_custom_call.1} parent=1 // pred_fallthru
      _
    %v81 = vld [vmem:[#allocation2] sm:$0xf]
    %v82 = vld [vmem:[#allocation5] sm:$0xf]
    %v83 = vld [vmem:[#allocation5 + $0x4] sm:$0xf]
    %v84 = vld [vmem:[#allocation5 + $0x8] sm:$0xf]
    %v85 = vld [vmem:[#allocation5 + $0xc] sm:$0xf]
    %v86 = vld [vmem:[#allocation5 + $0x10] sm:$0xf]
    %v87 = vld [vmem:[#allocation5 + $0x14] sm:$0xf]
    %v88 = vld [vmem:[#allocation5 + $0x18] sm:$0xf]
    %v89 = vld [vmem:[#allocation5 + $0x1c] sm:$0xf]
    %v90 = vld [vmem:[#allocation5 + $0x20] sm:$0xf]
    %v91 = vld [vmem:[#allocation5 + $0x24] sm:$0xf]
    %v92 = vld [vmem:[#allocation5 + $0x28] sm:$0xf]
    %v93 = vld [vmem:[#allocation5 + $0x2c] sm:$0xf]
    %v94 = vld [vmem:[#allocation5 + $0x30] sm:$0xf]
    %v95 = vld [vmem:[#allocation5 + $0x34] sm:$0xf]
    %v96 = vld [vmem:[#allocation5 + $0x38] sm:$0xf]
    %v97 = vld [vmem:[#allocation5 + $0x3c] sm:$0xf]
    %v98 = vld [vmem:[%s2] sm:$0x1]
    %v100 = vlaneseq
    %v101 = vshrl.u32 %v100, 7
    %v102 = vsub.s32 0, %v101
    %v103 = vrot.slane %v98, %v102
    %v121 = vunpack.c.l.b16 %v82
    %v122 = vunpack.c.l.b16 %v83
    %v123 = vunpack.c.l.b16 %v84
    %v124 = vunpack.c.l.b16 %v85
    %v125 = vunpack.c.l.b16 %v86
    %v126 = vunpack.c.l.b16 %v87
    %v127 = vunpack.c.l.b16 %v88
    %v128 = vunpack.c.l.b16 %v89
    %v129 = vunpack.c.l.b16 %v90
    %v130 = vunpack.c.l.b16 %v91
    %v131 = vunpack.c.l.b16 %v92
    %v132 = vunpack.c.l.b16 %v93
    %v133 = vunpack.c.l.b16 %v94
    %v134 = vunpack.c.l.b16 %v95
    %v135 = vunpack.c.l.b16 %v96
    %v136 = vunpack.c.l.b16 %v97
    %v137 = vpack.c.b16 %v122, %v121
    %v138 = vpack.c.b16 %v124, %v123
    %v139 = vpack.c.b16 %v126, %v125
    %v140 = vpack.c.b16 %v128, %v127
    %v141 = vpack.c.b16 %v130, %v129
    %v142 = vpack.c.b16 %v132, %v131
    %v143 = vpack.c.b16 %v134, %v133
    %v144 = vpack.c.b16 %v136, %v135
    %153 = vmatprep.subr.bf16.mxu0 0
    %154 = vmatpush1.bf16.msra.mxu0 %v137
    %155 = vmatprep.subr.bf16.mxu0 0
    %156 = vmatpush1.bf16.msra.mxu0 %v138
    %157 = vmatprep.subr.bf16.mxu0 0
    %158 = vmatpush1.bf16.msra.mxu0 %v139
    %159 = vmatprep.subr.bf16.mxu0 0
    %160 = vmatpush1.bf16.msra.mxu0 %v140
    %161 = vmatprep.subr.bf16.mxu0 0
    %162 = vmatpush1.bf16.msra.mxu0 %v141
    %163 = vmatprep.subr.bf16.mxu0 0
    %164 = vmatpush1.bf16.msra.mxu0 %v142
    %165 = vmatprep.subr.bf16.mxu0 0
    %166 = vmatpush1.bf16.msra.mxu0 %v143
    %167 = vmatprep.subr.bf16.mxu0 0
    %168 = vmatpush1.bf16.msra.mxu0 %v144
    %169 = vmatprep.subr.bf16.mxu0 0
    %170 = vmatpush1.bf16.msra.mxu0 0
    %171 = vmatprep.subr.bf16.mxu0 0
    %172 = vmatpush1.bf16.msra.mxu0 0
    %173 = vmatprep.subr.bf16.mxu0 0
    %174 = vmatpush1.bf16.msra.mxu0 0
    %175 = vmatprep.subr.bf16.mxu0 0
    %176 = vmatpush1.bf16.msra.mxu0 0
    %177 = vmatprep.subr.bf16.mxu0 0
    %178 = vmatpush1.bf16.msra.mxu0 0
    %179 = vmatprep.subr.bf16.mxu0 0
    %180 = vmatpush1.bf16.msra.mxu0 0
    %181 = vmatprep.subr.bf16.mxu0 0
    %182 = vmatpush1.bf16.msra.mxu0 0
    %183 = vmatprep.subr.bf16.mxu0 0
    %184 = vmatpush1.bf16.msra.mxu0 0
    %185 = vmatprep.mubr.bf16.mxu0 0
    %186 = vmatmul.mubr.bf16.gmra.mrb[0].mxu0 %v81
    %v187 = vpop.f32.mrb[0].mxu0
    %v188 = vadd.f32 %v103, %v187
    %v189 = vpop.f32.mrb[0].mxu0
    %v190 = vpop.f32.mrb[0].mxu0
    %v191 = vpop.f32.mrb[0].mxu0
    %192 = vdwg.mxu0
    %v193 = vmax.f32 %v188, 0.0
    %v194 = vpack.c.bf16 %v193, %v193
    %v195 = vld [vmem:[#allocation7] sm:$0xf]
    %v196 = vld [vmem:[#allocation7 + $0x4] sm:$0xf]
    %v197 = vld [vmem:[#allocation7 + $0x8] sm:$0xf]
    %v198 = vld [vmem:[#allocation7 + $0xc] sm:$0xf]
    %v199 = vld [vmem:[#allocation7 + $0x10] sm:$0xf]
    %v200 = vld [vmem:[#allocation7 + $0x14] sm:$0xf]
    %v201 = vld [vmem:[#allocation7 + $0x18] sm:$0xf]
    %v202 = vld [vmem:[#allocation7 + $0x1c] sm:$0xf]
    %v203 = vld [vmem:[#allocation7 + $0x20] sm:$0xf]
    %v204 = vld [vmem:[#allocation7 + $0x24] sm:$0xf]
    %v205 = vld [vmem:[#allocation7 + $0x28] sm:$0xf]
    %v206 = vld [vmem:[#allocation7 + $0x2c] sm:$0xf]
    %v207 = vld [vmem:[#allocation7 + $0x30] sm:$0xf]
    %v208 = vld [vmem:[#allocation7 + $0x34] sm:$0xf]
    %v209 = vld [vmem:[#allocation7 + $0x38] sm:$0xf]
    %v210 = vld [vmem:[#allocation7 + $0x3c] sm:$0xf]
    %v211 = vld [vmem:[%s4] sm:$0x1]
    %v213 = vlaneseq
    %v214 = vshrl.u32 %v213, 7
    %v215 = vsub.s32 0, %v214
    %v216 = vrot.slane %v211, %v215
    %v234 = vunpack.c.l.b16 %v195
    %v235 = vunpack.c.l.b16 %v196
    %v236 = vunpack.c.l.b16 %v197
    %v237 = vunpack.c.l.b16 %v198
    %v238 = vunpack.c.l.b16 %v199
    %v239 = vunpack.c.l.b16 %v200
    %v240 = vunpack.c.l.b16 %v201
    %v241 = vunpack.c.l.b16 %v202
    %v242 = vunpack.c.l.b16 %v203
    %v243 = vunpack.c.l.b16 %v204
    %v244 = vunpack.c.l.b16 %v205
    %v245 = vunpack.c.l.b16 %v206
    %v246 = vunpack.c.l.b16 %v207
    %v247 = vunpack.c.l.b16 %v208
    %v248 = vunpack.c.l.b16 %v209
    %v249 = vunpack.c.l.b16 %v210
    %v250 = vpack.c.b16 %v235, %v234
    %v251 = vpack.c.b16 %v237, %v236
    %v252 = vpack.c.b16 %v239, %v238
    %v253 = vpack.c.b16 %v241, %v240
    %v254 = vpack.c.b16 %v243, %v242
    %v255 = vpack.c.b16 %v245, %v244
    %v256 = vpack.c.b16 %v247, %v246
    %v257 = vpack.c.b16 %v249, %v248
    %266 = vmatprep.subr.bf16.mxu0 0
    %267 = vmatpush1.bf16.msra.mxu0 %v250
    %268 = vmatprep.subr.bf16.mxu0 0
    %269 = vmatpush1.bf16.msra.mxu0 %v251
    %270 = vmatprep.subr.bf16.mxu0 0
    %271 = vmatpush1.bf16.msra.mxu0 %v252
    %272 = vmatprep.subr.bf16.mxu0 0
    %273 = vmatpush1.bf16.msra.mxu0 %v253
    %274 = vmatprep.subr.bf16.mxu0 0
    %275 = vmatpush1.bf16.msra.mxu0 %v254
    %276 = vmatprep.subr.bf16.mxu0 0
    %277 = vmatpush1.bf16.msra.mxu0 %v255
    %278 = vmatprep.subr.bf16.mxu0 0
    %279 = vmatpush1.bf16.msra.mxu0 %v256
    %280 = vmatprep.subr.bf16.mxu0 0
    %281 = vmatpush1.bf16.msra.mxu0 %v257
    %282 = vmatprep.subr.bf16.mxu0 0
    %283 = vmatpush1.bf16.msra.mxu0 0
    %284 = vmatprep.subr.bf16.mxu0 0
    %285 = vmatpush1.bf16.msra.mxu0 0
    %286 = vmatprep.subr.bf16.mxu0 0
    %287 = vmatpush1.bf16.msra.mxu0 0
    %288 = vmatprep.subr.bf16.mxu0 0
    %289 = vmatpush1.bf16.msra.mxu0 0
    %290 = vmatprep.subr.bf16.mxu0 0
    %291 = vmatpush1.bf16.msra.mxu0 0
    %292 = vmatprep.subr.bf16.mxu0 0
    %293 = vmatpush1.bf16.msra.mxu0 0
    %294 = vmatprep.subr.bf16.mxu0 0
    %295 = vmatpush1.bf16.msra.mxu0 0
    %296 = vmatprep.subr.bf16.mxu0 0
    %297 = vmatpush1.bf16.msra.mxu0 0
    %298 = vmatprep.mubr.bf16.mxu0 0
    %299 = vmatmul.mubr.bf16.gmra.mrb[0].mxu0 %v194
    %v300 = vpop.f32.mrb[0].mxu0
    %v301 = vadd.f32 %v216, %v300
    %v302 = vpop.f32.mrb[0].mxu0
    %v303 = vpop.f32.mrb[0].mxu0
    %v304 = vpop.f32.mrb[0].mxu0
    %305 = vdwg.mxu0
    %v306 = vmax.f32 %v301, 0.0
    %v307 = vpack.c.bf16 %v306, %v306
    %s308 = scalar_lea.vmem [#allocation7], 64
    %v309 = vld [vmem:[%s308] sm:$0xf]
    %v310 = vld [vmem:[%s308 + $0x4] sm:$0xf]
    %v311 = vld [vmem:[%s308 + $0x8] sm:$0xf]
    %v312 = vld [vmem:[%s308 + $0xc] sm:$0xf]
    %v313 = vld [vmem:[%s308 + $0x10] sm:$0xf]
    %v314 = vld [vmem:[%s308 + $0x14] sm:$0xf]
    %v315 = vld [vmem:[%s308 + $0x18] sm:$0xf]
    %v316 = vld [vmem:[%s308 + $0x1c] sm:$0xf]
    %v317 = vld [vmem:[%s308 + $0x20] sm:$0xf]
    %v318 = vld [vmem:[%s308 + $0x24] sm:$0xf]
    %v319 = vld [vmem:[%s308 + $0x28] sm:$0xf]
    %v320 = vld [vmem:[%s308 + $0x2c] sm:$0xf]
    %v321 = vld [vmem:[%s308 + $0x30] sm:$0xf]
    %v322 = vld [vmem:[%s308 + $0x34] sm:$0xf]
    %v323 = vld [vmem:[%s308 + $0x38] sm:$0xf]
    %v324 = vld [vmem:[%s308 + $0x3c] sm:$0xf]
    %s325 = scalar_lea.vmem %s4, 1
    %v326 = vld [vmem:[%s325] sm:$0x1]
    %v328 = vlaneseq
    %v329 = vshrl.u32 %v328, 7
    %v330 = vsub.s32 0, %v329
    %v331 = vrot.slane %v326, %v330
    %v349 = vunpack.c.l.b16 %v309
    %v350 = vunpack.c.l.b16 %v310
    %v351 = vunpack.c.l.b16 %v311
    %v352 = vunpack.c.l.b16 %v312
    %v353 = vunpack.c.l.b16 %v313
    %v354 = vunpack.c.l.b16 %v314
    %v355 = vunpack.c.l.b16 %v315
    %v356 = vunpack.c.l.b16 %v316
    %v357 = vunpack.c.l.b16 %v317
    %v358 = vunpack.c.l.b16 %v318
    %v359 = vunpack.c.l.b16 %v319
    %v360 = vunpack.c.l.b16 %v320
    %v361 = vunpack.c.l.b16 %v321
    %v362 = vunpack.c.l.b16 %v322
    %v363 = vunpack.c.l.b16 %v323
    %v364 = vunpack.c.l.b16 %v324
    %v365 = vpack.c.b16 %v350, %v349
    %v366 = vpack.c.b16 %v352, %v351
    %v367 = vpack.c.b16 %v354, %v353
    %v368 = vpack.c.b16 %v356, %v355
    %v369 = vpack.c.b16 %v358, %v357
    %v370 = vpack.c.b16 %v360, %v359
    %v371 = vpack.c.b16 %v362, %v361
    %v372 = vpack.c.b16 %v364, %v363
    %381 = vmatprep.subr.bf16.mxu0 0
    %382 = vmatpush1.bf16.msra.mxu0 %v365
    %383 = vmatprep.subr.bf16.mxu0 0
    %384 = vmatpush1.bf16.msra.mxu0 %v366
    %385 = vmatprep.subr.bf16.mxu0 0
    %386 = vmatpush1.bf16.msra.mxu0 %v367
    %387 = vmatprep.subr.bf16.mxu0 0
    %388 = vmatpush1.bf16.msra.mxu0 %v368
    %389 = vmatprep.subr.bf16.mxu0 0
    %390 = vmatpush1.bf16.msra.mxu0 %v369
    %391 = vmatprep.subr.bf16.mxu0 0
    %392 = vmatpush1.bf16.msra.mxu0 %v370
    %393 = vmatprep.subr.bf16.mxu0 0
    %394 = vmatpush1.bf16.msra.mxu0 %v371
    %395 = vmatprep.subr.bf16.mxu0 0
    %396 = vmatpush1.bf16.msra.mxu0 %v372
    %397 = vmatprep.subr.bf16.mxu0 0
    %398 = vmatpush1.bf16.msra.mxu0 0
    %399 = vmatprep.subr.bf16.mxu0 0
    %400 = vmatpush1.bf16.msra.mxu0 0
    %401 = vmatprep.subr.bf16.mxu0 0
    %402 = vmatpush1.bf16.msra.mxu0 0
    %403 = vmatprep.subr.bf16.mxu0 0
    %404 = vmatpush1.bf16.msra.mxu0 0
    %405 = vmatprep.subr.bf16.mxu0 0
    %406 = vmatpush1.bf16.msra.mxu0 0
    %407 = vmatprep.subr.bf16.mxu0 0
    %408 = vmatpush1.bf16.msra.mxu0 0
    %409 = vmatprep.subr.bf16.mxu0 0
    %410 = vmatpush1.bf16.msra.mxu0 0
    %411 = vmatprep.subr.bf16.mxu0 0
    %412 = vmatpush1.bf16.msra.mxu0 0
    %413 = vmatprep.mubr.bf16.mxu0 0
    %414 = vmatmul.mubr.bf16.gmra.mrb[0].mxu0 %v307
    %v415 = vpop.f32.mrb[0].mxu0
    %v416 = vadd.f32 %v331, %v415
    %v417 = vpop.f32.mrb[0].mxu0
    %v418 = vpop.f32.mrb[0].mxu0
    %v419 = vpop.f32.mrb[0].mxu0
    %420 = vdwg.mxu0
    %v421 = vmax.f32 %v416, 0.0
    %v422 = vpack.c.bf16 %v421, %v421
    %s423 = scalar_lea.vmem [#allocation7], 128
    %v424 = vld [vmem:[%s423] sm:$0xf]
    %v425 = vld [vmem:[%s423 + $0x4] sm:$0xf]
    %v426 = vld [vmem:[%s423 + $0x8] sm:$0xf]
    %v427 = vld [vmem:[%s423 + $0xc] sm:$0xf]
    %v428 = vld [vmem:[%s423 + $0x10] sm:$0xf]
    %v429 = vld [vmem:[%s423 + $0x14] sm:$0xf]
    %v430 = vld [vmem:[%s423 + $0x18] sm:$0xf]
    %v431 = vld [vmem:[%s423 + $0x1c] sm:$0xf]
    %v432 = vld [vmem:[%s423 + $0x20] sm:$0xf]
    %v433 = vld [vmem:[%s423 + $0x24] sm:$0xf]
    %v434 = vld [vmem:[%s423 + $0x28] sm:$0xf]
    %v435 = vld [vmem:[%s423 + $0x2c] sm:$0xf]
    %v436 = vld [vmem:[%s423 + $0x30] sm:$0xf]
    %v437 = vld [vmem:[%s423 + $0x34] sm:$0xf]
    %v438 = vld [vmem:[%s423 + $0x38] sm:$0xf]
    %v439 = vld [vmem:[%s423 + $0x3c] sm:$0xf]
    %s440 = scalar_lea.vmem %s4, 2
    %v441 = vld [vmem:[%s440] sm:$0x1]
    %v443 = vlaneseq
    %v444 = vshrl.u32 %v443, 7
    %v445 = vsub.s32 0, %v444
    %v446 = vrot.slane %v441, %v445
    %v464 = vunpack.c.l.b16 %v424
    %v465 = vunpack.c.l.b16 %v425
    %v466 = vunpack.c.l.b16 %v426
    %v467 = vunpack.c.l.b16 %v427
    %v468 = vunpack.c.l.b16 %v428
    %v469 = vunpack.c.l.b16 %v429
    %v470 = vunpack.c.l.b16 %v430
    %v471 = vunpack.c.l.b16 %v431
    %v472 = vunpack.c.l.b16 %v432
    %v473 = vunpack.c.l.b16 %v433
    %v474 = vunpack.c.l.b16 %v434
    %v475 = vunpack.c.l.b16 %v435
    %v476 = vunpack.c.l.b16 %v436
    %v477 = vunpack.c.l.b16 %v437
    %v478 = vunpack.c.l.b16 %v438
    %v479 = vunpack.c.l.b16 %v439
    %v480 = vpack.c.b16 %v465, %v464
    %v481 = vpack.c.b16 %v467, %v466
    %v482 = vpack.c.b16 %v469, %v468
    %v483 = vpack.c.b16 %v471, %v470
    %v484 = vpack.c.b16 %v473, %v472
    %v485 = vpack.c.b16 %v475, %v474
    %v486 = vpack.c.b16 %v477, %v476
    %v487 = vpack.c.b16 %v479, %v478
    %496 = vmatprep.subr.bf16.mxu0 0
    %497 = vmatpush1.bf16.msra.mxu0 %v480
    %498 = vmatprep.subr.bf16.mxu0 0
    %499 = vmatpush1.bf16.msra.mxu0 %v481
    %500 = vmatprep.subr.bf16.mxu0 0
    %501 = vmatpush1.bf16.msra.mxu0 %v482
    %502 = vmatprep.subr.bf16.mxu0 0
    %503 = vmatpush1.bf16.msra.mxu0 %v483
    %504 = vmatprep.subr.bf16.mxu0 0
    %505 = vmatpush1.bf16.msra.mxu0 %v484
    %506 = vmatprep.subr.bf16.mxu0 0
    %507 = vmatpush1.bf16.msra.mxu0 %v485
    %508 = vmatprep.subr.bf16.mxu0 0
    %509 = vmatpush1.bf16.msra.mxu0 %v486
    %510 = vmatprep.subr.bf16.mxu0 0
    %511 = vmatpush1.bf16.msra.mxu0 %v487
    %512 = vmatprep.subr.bf16.mxu0 0
    %513 = vmatpush1.bf16.msra.mxu0 0
    %514 = vmatprep.subr.bf16.mxu0 0
    %515 = vmatpush1.bf16.msra.mxu0 0
    %516 = vmatprep.subr.bf16.mxu0 0
    %517 = vmatpush1.bf16.msra.mxu0 0
    %518 = vmatprep.subr.bf16.mxu0 0
    %519 = vmatpush1.bf16.msra.mxu0 0
    %520 = vmatprep.subr.bf16.mxu0 0
    %521 = vmatpush1.bf16.msra.mxu0 0
    %522 = vmatprep.subr.bf16.mxu0 0
    %523 = vmatpush1.bf16.msra.mxu0 0
    %524 = vmatprep.subr.bf16.mxu0 0
    %525 = vmatpush1.bf16.msra.mxu0 0
    %526 = vmatprep.subr.bf16.mxu0 0
    %527 = vmatpush1.bf16.msra.mxu0 0
    %528 = vmatprep.mubr.bf16.mxu0 0
    %529 = vmatmul.mubr.bf16.gmra.mrb[0].mxu0 %v422
    %v530 = vpop.f32.mrb[0].mxu0
    %v531 = vadd.f32 %v446, %v530
    %v532 = vpop.f32.mrb[0].mxu0
    %v533 = vpop.f32.mrb[0].mxu0
    %v534 = vpop.f32.mrb[0].mxu0
    %535 = vdwg.mxu0
    %v536 = vxor.u32 %v531, 2147483648
    %v537 = vmul.f32 %v536, 1.442695
    %v538 = vpow.pop %v537
    %v539 = vadd.f32 %v538, 1.0
    %v540 = vrcp.pop %v539
    %v541 = vmul.f32 1.0, %v540
    %v542 = vpack.c.bf16 %v541, %v541
    %v543 = vld [vmem:[#allocation8] sm:$0xf]
    %v544 = vld [vmem:[#allocation8 + $0x4] sm:$0xf]
    %v545 = vld [vmem:[#allocation8 + $0x8] sm:$0xf]
    %v546 = vld [vmem:[#allocation8 + $0xc] sm:$0xf]
    %v547 = vld [vmem:[#allocation8 + $0x10] sm:$0xf]
    %v548 = vld [vmem:[#allocation8 + $0x14] sm:$0xf]
    %v549 = vld [vmem:[#allocation8 + $0x18] sm:$0xf]
    %v550 = vld [vmem:[#allocation8 + $0x1c] sm:$0xf]
    %v551 = vld [vmem:[#allocation8 + $0x20] sm:$0xf]
    %v552 = vld [vmem:[#allocation8 + $0x24] sm:$0xf]
    %v553 = vld [vmem:[#allocation8 + $0x28] sm:$0xf]
    %v554 = vld [vmem:[#allocation8 + $0x2c] sm:$0xf]
    %v555 = vld [vmem:[#allocation8 + $0x30] sm:$0xf]
    %v556 = vld [vmem:[#allocation8 + $0x34] sm:$0xf]
    %v557 = vld [vmem:[#allocation8 + $0x38] sm:$0xf]
    %v558 = vld [vmem:[#allocation8 + $0x3c] sm:$0xf]
    %v559 = vld [vmem:[%s6] sm:$0x1]
    %v561 = vlaneseq
    %v562 = vshrl.u32 %v561, 7
    %v563 = vsub.s32 0, %v562
    %v564 = vrot.slane %v559, %v563
    %v582 = vunpack.c.l.b16 %v543
    %v583 = vunpack.c.l.b16 %v544
    %v584 = vunpack.c.l.b16 %v545
    %v585 = vunpack.c.l.b16 %v546
    %v586 = vunpack.c.l.b16 %v547
    %v587 = vunpack.c.l.b16 %v548
    %v588 = vunpack.c.l.b16 %v549
    %v589 = vunpack.c.l.b16 %v550
    %v590 = vunpack.c.l.b16 %v551
    %v591 = vunpack.c.l.b16 %v552
    %v592 = vunpack.c.l.b16 %v553
    %v593 = vunpack.c.l.b16 %v554
    %v594 = vunpack.c.l.b16 %v555
    %v595 = vunpack.c.l.b16 %v556
    %v596 = vunpack.c.l.b16 %v557
    %v597 = vunpack.c.l.b16 %v558
    %v598 = vpack.c.b16 %v583, %v582
    %v599 = vpack.c.b16 %v585, %v584
    %v600 = vpack.c.b16 %v587, %v586
    %v601 = vpack.c.b16 %v589, %v588
    %v602 = vpack.c.b16 %v591, %v590
    %v603 = vpack.c.b16 %v593, %v592
    %v604 = vpack.c.b16 %v595, %v594
    %v605 = vpack.c.b16 %v597, %v596
    %614 = vmatprep.subr.bf16.mxu0 0
    %615 = vmatpush1.bf16.msra.mxu0 %v598
    %616 = vmatprep.subr.bf16.mxu0 0
    %617 = vmatpush1.bf16.msra.mxu0 %v599
    %618 = vmatprep.subr.bf16.mxu0 0
    %619 = vmatpush1.bf16.msra.mxu0 %v600
    %620 = vmatprep.subr.bf16.mxu0 0
    %621 = vmatpush1.bf16.msra.mxu0 %v601
    %622 = vmatprep.subr.bf16.mxu0 0
    %623 = vmatpush1.bf16.msra.mxu0 %v602
    %624 = vmatprep.subr.bf16.mxu0 0
    %625 = vmatpush1.bf16.msra.mxu0 %v603
    %626 = vmatprep.subr.bf16.mxu0 0
    %627 = vmatpush1.bf16.msra.mxu0 %v604
    %628 = vmatprep.subr.bf16.mxu0 0
    %629 = vmatpush1.bf16.msra.mxu0 %v605
    %630 = vmatprep.subr.bf16.mxu0 0
    %631 = vmatpush1.bf16.msra.mxu0 0
    %632 = vmatprep.subr.bf16.mxu0 0
    %633 = vmatpush1.bf16.msra.mxu0 0
    %634 = vmatprep.subr.bf16.mxu0 0
    %635 = vmatpush1.bf16.msra.mxu0 0
    %636 = vmatprep.subr.bf16.mxu0 0
    %637 = vmatpush1.bf16.msra.mxu0 0
    %638 = vmatprep.subr.bf16.mxu0 0
    %639 = vmatpush1.bf16.msra.mxu0 0
    %640 = vmatprep.subr.bf16.mxu0 0
    %641 = vmatpush1.bf16.msra.mxu0 0
    %642 = vmatprep.subr.bf16.mxu0 0
    %643 = vmatpush1.bf16.msra.mxu0 0
    %644 = vmatprep.subr.bf16.mxu0 0
    %645 = vmatpush1.bf16.msra.mxu0 0
    %646 = vmatprep.mubr.bf16.mxu0 0
    %647 = vmatmul.mubr.bf16.gmra.mrb[0].mxu0 %v542
    %v648 = vpop.f32.mrb[0].mxu0
    %v649 = vadd.f32 %v564, %v648
    %v650 = vpop.f32.mrb[0].mxu0
    %v651 = vpop.f32.mrb[0].mxu0
    %v652 = vpop.f32.mrb[0].mxu0
    %653 = vdwg.mxu0
    %654 = vst [vmem:[#allocation10] sm:$0xff] %v649
    // Predicated region
    $region46: #{tpu_custom_call.1} parent=1 // pred_check
      _
    $region47: #{tpu_custom_call.1} parent=1 // pred_check_branch
      %656 = sbr.rel (0) target = $region49
    $region48: #{tpu_custom_call.1} parent=1 // pred_region
      %s658 = ssub.s32 128, 128
      %659 = vsyncadd [#allocation4], %s658
      %s661 = sshll.u32 [#allocation10], 4
      %s662 = int_to_ptr.vmem [resolvable:$true] %s661
      %664 = dma.vmem_to_hbm [thread:$0]  %s662, 128, %s7, [#allocation4]
    $region49: #{tpu_custom_call.1} parent=1 // pred_fallthru
      _
    // Predicated region
    $region50: #{tpu_custom_call.1} parent=1 // pred_check
      _
    $region51: #{tpu_custom_call.1} parent=1 // pred_check_branch
      %666 = sbr.rel (0) target = $region53
    $region52: #{tpu_custom_call.1} parent=1 // pred_region
      %667 = dma.done [#allocation4], 128
    $region53: #{tpu_custom_call.1} parent=1 // pred_fallthru
      _
    %668 = vsyncpa [#allocation3], 1
    %669 = vsyncpa [#allocation6], 1
    %670 = vsyncpa [#allocation9], 1
    %671 = vsyncpa [#allocation4], 1

// kernel: tpu_custom_call.1
$region0: #{tpu_custom_call.1}
  #allocation0 [shape = 'u32[]', space=smem, size = 0x4, offset = 0x4, fixed_abs, tag = 'smem constant byte address 0x4 - core index']
  #allocation1 [shape = 'u32[144,128]{1,0:T(1,128)}', space=vmem, size = 0x12000, scoped, tag = 'internal scratch']
  %s0 = inlined_call_operand.hbm [shape: bf16[8,128], index: 0, kind: input, shape index: {}]
  %s1 = inlined_call_operand.hbm [shape: bf16[128,128], index: 1, kind: input, shape index: {}]
  %s2 = inlined_call_operand.vmem [shape: f32[1,128], index: 2, kind: input, shape index: {}]
  %s3 = inlined_call_operand.hbm [shape: bf16[3,128,128], index: 3, kind: input, shape index: {}]
  %s4 = inlined_call_operand.vmem [shape: f32[3,1,128], index: 4, kind: input, shape index: {}]
  %s5 = inlined_call_operand.hbm [shape: bf16[128,128], index: 5, kind: input, shape index: {}]
  %s6 = inlined_call_operand.vmem [shape: f32[1,128], index: 6, kind: input, shape index: {}]
  %s7 = inlined_call_operand.hbm [shape: f32[8,128], index: 7, kind: output, shape index: {}]
  %s8 = sld [smem:[#allocation0]]
  $region54: #{tpu_custom_call.1} parent=0
    _
  %s10 = ssub.s32 1, %s8
  %s11 = scalar_select 0, %s10, %s8
  $region1: #{tpu_custom_call.1} parent=0
    #allocation2 [shape = 'u8[2048]{0}', space=vmem, size = 0x800, scoped, tag = 'input window, operand 0, single buffered']
    #allocation3 [shape = 's32[1]{0}', space=sflag, size = 0x4, scoped, tag = 'scoped memory for tpu_custom_call.1']
    #allocation4 [shape = 's32[1]{0}', space=sflag, size = 0x4, scoped, tag = 'scoped memory for tpu_custom_call.1']
    #allocation5 [shape = 'u8[32768]{0}', space=vmem, size = 0x8000, scoped, tag = 'input window, operand 1, single buffered']
    #allocation6 [shape = 's32[1]{0}', space=sflag, size = 0x4, scoped, tag = 'scoped memory for tpu_custom_call.1']
    #allocation7 [shape = 'u8[98304]{0}', space=vmem, size = 0x18000, scoped, tag = 'input window, operand 3, single buffered']
    #allocation8 [shape = 'u8[32768]{0}', space=vmem, size = 0x8000, scoped, tag = 'input window, operand 5, single buffered']
    #allocation9 [shape = 's32[1]{0}', space=sflag, size = 0x4, scoped, tag = 'scoped memory for tpu_custom_call.1']
    #allocation10 [shape = 'u8[4096]{0}', space=vmem, size = 0x1000, scoped, tag = 'output window, operand 0, single buffered']
    %12 = vsyncpa [#allocation3], 0
    %13 = vsyncpa [#allocation6], 0
    %14 = vsyncpa [#allocation9], 0
    %15 = vsyncpa [#allocation4], 0
    // Predicated region
    $region2: #{tpu_custom_call.1} parent=1 // pred_check
      _
    $region3: #{tpu_custom_call.1} parent=1 // pred_check_branch
      %17 = sbr.rel (0) target = $region5
    $region4: #{tpu_custom_call.1} parent=1 // pred_region
      %s19 = ssub.s32 64, 64
      %20 = vsyncadd [#allocation3], %s19
      %s22 = sshll.u32 [#allocation2], 4
      %s23 = int_to_ptr.vmem [resolvable:$true] %s22
      %25 = dma.hbm_to_vmem [thread:$0]  %s0, 64, %s23, [#allocation3]
    $region5: #{tpu_custom_call.1} parent=1 // pred_fallthru
      _
    // Predicated region
    $region6: #{tpu_custom_call.1} parent=1 // pred_check
      _
    $region7: #{tpu_custom_call.1} parent=1 // pred_check_branch
      %27 = sbr.rel (0) target = $region9
    $region8: #{tpu_custom_call.1} parent=1 // pred_region
      %s29 = ssub.s32 1024, 1024
      %30 = vsyncadd [#allocation6], %s29
      %s31 = sshll.u32 [#allocation5], 4
      %s32 = int_to_ptr.vmem [resolvable:$true] %s31
      %37 = dma.hbm_to_vmem [thread:$0]  %s1, 1024, %s32, [#allocation6], 64, 64, 4
    $region9: #{tpu_custom_call.1} parent=1 // pred_fallthru
      _
    // Predicated region
    $region10: #{tpu_custom_call.1} parent=1 // pred_check
      _
    $region11: #{tpu_custom_call.1} parent=1 // pred_check_branch
      %39 = sbr.rel (0) target = $region13
    $region12: #{tpu_custom_call.1} parent=1 // pred_region
      _
    $region13: #{tpu_custom_call.1} parent=1 // pred_fallthru
      _
    // Predicated region
    $region14: #{tpu_custom_call.1} parent=1 // pred_check
      _
    $region15: #{tpu_custom_call.1} parent=1 // pred_check_branch
      %41 = sbr.rel (0) target = $region17
    $region16: #{tpu_custom_call.1} parent=1 // pred_region
      %s43 = ssub.s32 3072, 3072
      %44 = vsyncadd [#allocation6], %s43
      %s45 = sshll.u32 [#allocation7], 4
      %s46 = int_to_ptr.vmem [resolvable:$true] %s45
      %51 = dma.hbm_to_vmem [thread:$0]  %s3, 3072, %s46, [#allocation6], 64, 64, 4
    $region17: #{tpu_custom_call.1} parent=1 // pred_fallthru
      _
    // Predicated region
    $region18: #{tpu_custom_call.1} parent=1 // pred_check
      _
    $region19: #{tpu_custom_call.1} parent=1 // pred_check_branch
      %53 = sbr.rel (0) target = $region21
    $region20: #{tpu_custom_call.1} parent=1 // pred_region
      _
    $region21: #{tpu_custom_call.1} parent=1 // pred_fallthru
      _
    // Predicated region
    $region22: #{tpu_custom_call.1} parent=1 // pred_check
      _
    $region23: #{tpu_custom_call.1} parent=1 // pred_check_branch
      %55 = sbr.rel (0) target = $region25
    $region24: #{tpu_custom_call.1} parent=1 // pred_region
      %s57 = ssub.s32 1024, 1024
      %58 = vsyncadd [#allocation9], %s57
      %s59 = sshll.u32 [#allocation8], 4
      %s60 = int_to_ptr.vmem [resolvable:$true] %s59
      %65 = dma.hbm_to_vmem [thread:$0]  %s5, 1024, %s60, [#allocation9], 64, 64, 4
    $region25: #{tpu_custom_call.1} parent=1 // pred_fallthru
      _
    // Predicated region
    $region26: #{tpu_custom_call.1} parent=1 // pred_check
      _
    $region27: #{tpu_custom_call.1} parent=1 // pred_check_branch
      %67 = sbr.rel (0) target = $region29
    $region28: #{tpu_custom_call.1} parent=1 // pred_region
      _
    $region29: #{tpu_custom_call.1} parent=1 // pred_fallthru
      _
    // Predicated region
    $region30: #{tpu_custom_call.1} parent=1 // pred_check
      _
    $region31: #{tpu_custom_call.1} parent=1 // pred_check_branch
      %69 = sbr.rel (0) target = $region33
    $region32: #{tpu_custom_call.1} parent=1 // pred_region
      %70 = dma.done [#allocation3], 64
    $region33: #{tpu_custom_call.1} parent=1 // pred_fallthru
      _
    // Predicated region
    $region34: #{tpu_custom_call.1} parent=1 // pred_check
      _
    $region35: #{tpu_custom_call.1} parent=1 // pred_check_branch
      %72 = sbr.rel (0) target = $region37
    $region36: #{tpu_custom_call.1} parent=1 // pred_region
      %73 = dma.done [#allocation6], 1024
    $region37: #{tpu_custom_call.1} parent=1 // pred_fallthru
      _
    // Predicated region
    $region38: #{tpu_custom_call.1} parent=1 // pred_check
      _
    $region39: #{tpu_custom_call.1} parent=1 // pred_check_branch
      %75 = sbr.rel (0) target = $region41
    $region40: #{tpu_custom_call.1} parent=1 // pred_region
      %76 = dma.done [#allocation6], 3072
    $region41: #{tpu_custom_call.1} parent=1 // pred_fallthru
      _
    // Predicated region
    $region42: #{tpu_custom_call.1} parent=1 // pred_check
      _
    $region43: #{tpu_custom_call.1} parent=1 // pred_check_branch
      %78 = sbr.rel (0) target = $region45
    $region44: #{tpu_custom_call.1} parent=1 // pred_region
      %79 = dma.done [#allocation9], 1024
    $region45: #{tpu_custom_call.1} parent=1 // pred_fallthru
      _
    %v81 = vld [vmem:[#allocation2] sm:$0xf]
    %v82 = vld [vmem:[#allocation5] sm:$0xf]
    %v83 = vld [vmem:[#allocation5 + $0x4] sm:$0xf]
    %v84 = vld [vmem:[#allocation5 + $0x8] sm:$0xf]
    %v85 = vld [vmem:[#allocation5 + $0xc] sm:$0xf]
    %v86 = vld [vmem:[#allocation5 + $0x10] sm:$0xf]
    %v87 = vld [vmem:[#allocation5 + $0x14] sm:$0xf]
    %v88 = vld [vmem:[#allocation5 + $0x18] sm:$0xf]
    %v89 = vld [vmem:[#allocation5 + $0x1c] sm:$0xf]
    %v90 = vld [vmem:[#allocation5 + $0x20] sm:$0xf]
    %v91 = vld [vmem:[#allocation5 + $0x24] sm:$0xf]
    %v92 = vld [vmem:[#allocation5 + $0x28] sm:$0xf]
    %v93 = vld [vmem:[#allocation5 + $0x2c] sm:$0xf]
    %v94 = vld [vmem:[#allocation5 + $0x30] sm:$0xf]
    %v95 = vld [vmem:[#allocation5 + $0x34] sm:$0xf]
    %v96 = vld [vmem:[#allocation5 + $0x38] sm:$0xf]
    %v97 = vld [vmem:[#allocation5 + $0x3c] sm:$0xf]
    %v98 = vld [vmem:[%s2] sm:$0x1]
    %v100 = vlaneseq
    %v101 = vshrl.u32 %v100, 7
    %v102 = vsub.s32 0, %v101
    %v103 = vrot.slane %v98, %v102
    %v121 = vunpack.c.l.b16 %v82
    %v122 = vunpack.c.l.b16 %v83
    %v123 = vunpack.c.l.b16 %v84
    %v124 = vunpack.c.l.b16 %v85
    %v125 = vunpack.c.l.b16 %v86
    %v126 = vunpack.c.l.b16 %v87
    %v127 = vunpack.c.l.b16 %v88
    %v128 = vunpack.c.l.b16 %v89
    %v129 = vunpack.c.l.b16 %v90
    %v130 = vunpack.c.l.b16 %v91
    %v131 = vunpack.c.l.b16 %v92
    %v132 = vunpack.c.l.b16 %v93
    %v133 = vunpack.c.l.b16 %v94
    %v134 = vunpack.c.l.b16 %v95
    %v135 = vunpack.c.l.b16 %v96
    %v136 = vunpack.c.l.b16 %v97
    %v137 = vpack.c.b16 %v122, %v121
    %v138 = vpack.c.b16 %v124, %v123
    %v139 = vpack.c.b16 %v126, %v125
    %v140 = vpack.c.b16 %v128, %v127
    %v141 = vpack.c.b16 %v130, %v129
    %v142 = vpack.c.b16 %v132, %v131
    %v143 = vpack.c.b16 %v134, %v133
    %v144 = vpack.c.b16 %v136, %v135
    %153 = vmatprep.subr.bf16.mxu0 0
    %154 = vmatpush1.bf16.msra.mxu0 %v137
    %155 = vmatprep.subr.bf16.mxu0 0
    %156 = vmatpush1.bf16.msra.mxu0 %v138
    %157 = vmatprep.subr.bf16.mxu0 0
    %158 = vmatpush1.bf16.msra.mxu0 %v139
    %159 = vmatprep.subr.bf16.mxu0 0
    %160 = vmatpush1.bf16.msra.mxu0 %v140
    %161 = vmatprep.subr.bf16.mxu0 0
    %162 = vmatpush1.bf16.msra.mxu0 %v141
    %163 = vmatprep.subr.bf16.mxu0 0
    %164 = vmatpush1.bf16.msra.mxu0 %v142
    %165 = vmatprep.subr.bf16.mxu0 0
    %166 = vmatpush1.bf16.msra.mxu0 %v143
    %167 = vmatprep.subr.bf16.mxu0 0
    %168 = vmatpush1.bf16.msra.mxu0 %v144
    %169 = vmatprep.subr.bf16.mxu0 0
    %170 = vmatpush1.bf16.msra.mxu0 0
    %171 = vmatprep.subr.bf16.mxu0 0
    %172 = vmatpush1.bf16.msra.mxu0 0
    %173 = vmatprep.subr.bf16.mxu0 0
    %174 = vmatpush1.bf16.msra.mxu0 0
    %175 = vmatprep.subr.bf16.mxu0 0
    %176 = vmatpush1.bf16.msra.mxu0 0
    %177 = vmatprep.subr.bf16.mxu0 0
    %178 = vmatpush1.bf16.msra.mxu0 0
    %179 = vmatprep.subr.bf16.mxu0 0
    %180 = vmatpush1.bf16.msra.mxu0 0
    %181 = vmatprep.subr.bf16.mxu0 0
    %182 = vmatpush1.bf16.msra.mxu0 0
    %183 = vmatprep.subr.bf16.mxu0 0
    %184 = vmatpush1.bf16.msra.mxu0 0
    %185 = vmatprep.mubr.bf16.mxu0 0
    %186 = vmatmul.mubr.bf16.gmra.mrb[0].mxu0 %v81
    %v187 = vpop.f32.mrb[0].mxu0
    %v188 = vadd.f32 %v103, %v187
    %v189 = vpop.f32.mrb[0].mxu0
    %v190 = vpop.f32.mrb[0].mxu0
    %v191 = vpop.f32.mrb[0].mxu0
    %192 = vdwg.mxu0
    %v193 = vmax.f32 %v188, 0.0
    %v194 = vpack.c.bf16 %v193, %v193
    %v195 = vld [vmem:[#allocation7] sm:$0xf]
    %v196 = vld [vmem:[#allocation7 + $0x4] sm:$0xf]
    %v197 = vld [vmem:[#allocation7 + $0x8] sm:$0xf]
    %v198 = vld [vmem:[#allocation7 + $0xc] sm:$0xf]
    %v199 = vld [vmem:[#allocation7 + $0x10] sm:$0xf]
    %v200 = vld [vmem:[#allocation7 + $0x14] sm:$0xf]
    %v201 = vld [vmem:[#allocation7 + $0x18] sm:$0xf]
    %v202 = vld [vmem:[#allocation7 + $0x1c] sm:$0xf]
    %v203 = vld [vmem:[#allocation7 + $0x20] sm:$0xf]
    %v204 = vld [vmem:[#allocation7 + $0x24] sm:$0xf]
    %v205 = vld [vmem:[#allocation7 + $0x28] sm:$0xf]
    %v206 = vld [vmem:[#allocation7 + $0x2c] sm:$0xf]
    %v207 = vld [vmem:[#allocation7 + $0x30] sm:$0xf]
    %v208 = vld [vmem:[#allocation7 + $0x34] sm:$0xf]
    %v209 = vld [vmem:[#allocation7 + $0x38] sm:$0xf]
    %v210 = vld [vmem:[#allocation7 + $0x3c] sm:$0xf]
    %v211 = vld [vmem:[%s4] sm:$0x1]
    %v213 = vlaneseq
    %v214 = vshrl.u32 %v213, 7
    %v215 = vsub.s32 0, %v214
    %v216 = vrot.slane %v211, %v215
    %v234 = vunpack.c.l.b16 %v195
    %v235 = vunpack.c.l.b16 %v196
    %v236 = vunpack.c.l.b16 %v197
    %v237 = vunpack.c.l.b16 %v198
    %v238 = vunpack.c.l.b16 %v199
    %v239 = vunpack.c.l.b16 %v200
    %v240 = vunpack.c.l.b16 %v201
    %v241 = vunpack.c.l.b16 %v202
    %v242 = vunpack.c.l.b16 %v203
    %v243 = vunpack.c.l.b16 %v204
    %v244 = vunpack.c.l.b16 %v205
    %v245 = vunpack.c.l.b16 %v206
    %v246 = vunpack.c.l.b16 %v207
    %v247 = vunpack.c.l.b16 %v208
    %v248 = vunpack.c.l.b16 %v209
    %v249 = vunpack.c.l.b16 %v210
    %v250 = vpack.c.b16 %v235, %v234
    %v251 = vpack.c.b16 %v237, %v236
    %v252 = vpack.c.b16 %v239, %v238
    %v253 = vpack.c.b16 %v241, %v240
    %v254 = vpack.c.b16 %v243, %v242
    %v255 = vpack.c.b16 %v245, %v244
    %v256 = vpack.c.b16 %v247, %v246
    %v257 = vpack.c.b16 %v249, %v248
    %266 = vmatprep.subr.bf16.mxu0 0
    %267 = vmatpush1.bf16.msra.mxu0 %v250
    %268 = vmatprep.subr.bf16.mxu0 0
    %269 = vmatpush1.bf16.msra.mxu0 %v251
    %270 = vmatprep.subr.bf16.mxu0 0
    %271 = vmatpush1.bf16.msra.mxu0 %v252
    %272 = vmatprep.subr.bf16.mxu0 0
    %273 = vmatpush1.bf16.msra.mxu0 %v253
    %274 = vmatprep.subr.bf16.mxu0 0
    %275 = vmatpush1.bf16.msra.mxu0 %v254
    %276 = vmatprep.subr.bf16.mxu0 0
    %277 = vmatpush1.bf16.msra.mxu0 %v255
    %278 = vmatprep.subr.bf16.mxu0 0
    %279 = vmatpush1.bf16.msra.mxu0 %v256
    %280 = vmatprep.subr.bf16.mxu0 0
    %281 = vmatpush1.bf16.msra.mxu0 %v257
    %282 = vmatprep.subr.bf16.mxu0 0
    %283 = vmatpush1.bf16.msra.mxu0 0
    %284 = vmatprep.subr.bf16.mxu0 0
    %285 = vmatpush1.bf16.msra.mxu0 0
    %286 = vmatprep.subr.bf16.mxu0 0
    %287 = vmatpush1.bf16.msra.mxu0 0
    %288 = vmatprep.subr.bf16.mxu0 0
    %289 = vmatpush1.bf16.msra.mxu0 0
    %290 = vmatprep.subr.bf16.mxu0 0
    %291 = vmatpush1.bf16.msra.mxu0 0
    %292 = vmatprep.subr.bf16.mxu0 0
    %293 = vmatpush1.bf16.msra.mxu0 0
    %294 = vmatprep.subr.bf16.mxu0 0
    %295 = vmatpush1.bf16.msra.mxu0 0
    %296 = vmatprep.subr.bf16.mxu0 0
    %297 = vmatpush1.bf16.msra.mxu0 0
    %298 = vmatprep.mubr.bf16.mxu0 0
    %299 = vmatmul.mubr.bf16.gmra.mrb[0].mxu0 %v194
    %v300 = vpop.f32.mrb[0].mxu0
    %v301 = vadd.f32 %v216, %v300
    %v302 = vpop.f32.mrb[0].mxu0
    %v303 = vpop.f32.mrb[0].mxu0
    %v304 = vpop.f32.mrb[0].mxu0
    %305 = vdwg.mxu0
    %v306 = vmax.f32 %v301, 0.0
    %v307 = vpack.c.bf16 %v306, %v306
    %s308 = scalar_lea.vmem [#allocation7], 64
    %v309 = vld [vmem:[%s308] sm:$0xf]
    %v310 = vld [vmem:[%s308 + $0x4] sm:$0xf]
    %v311 = vld [vmem:[%s308 + $0x8] sm:$0xf]
    %v312 = vld [vmem:[%s308 + $0xc] sm:$0xf]
    %v313 = vld [vmem:[%s308 + $0x10] sm:$0xf]
    %v314 = vld [vmem:[%s308 + $0x14] sm:$0xf]
    %v315 = vld [vmem:[%s308 + $0x18] sm:$0xf]
    %v316 = vld [vmem:[%s308 + $0x1c] sm:$0xf]
    %v317 = vld [vmem:[%s308 + $0x20] sm:$0xf]
    %v318 = vld [vmem:[%s308 + $0x24] sm:$0xf]
    %v319 = vld [vmem:[%s308 + $0x28] sm:$0xf]
    %v320 = vld [vmem:[%s308 + $0x2c] sm:$0xf]
    %v321 = vld [vmem:[%s308 + $0x30] sm:$0xf]
    %v322 = vld [vmem:[%s308 + $0x34] sm:$0xf]
    %v323 = vld [vmem:[%s308 + $0x38] sm:$0xf]
    %v324 = vld [vmem:[%s308 + $0x3c] sm:$0xf]
    %s325 = scalar_lea.vmem %s4, 1
    %v326 = vld [vmem:[%s325] sm:$0x1]
    %v328 = vlaneseq
    %v329 = vshrl.u32 %v328, 7
    %v330 = vsub.s32 0, %v329
    %v331 = vrot.slane %v326, %v330
    %v349 = vunpack.c.l.b16 %v309
    %v350 = vunpack.c.l.b16 %v310
    %v351 = vunpack.c.l.b16 %v311
    %v352 = vunpack.c.l.b16 %v312
    %v353 = vunpack.c.l.b16 %v313
    %v354 = vunpack.c.l.b16 %v314
    %v355 = vunpack.c.l.b16 %v315
    %v356 = vunpack.c.l.b16 %v316
    %v357 = vunpack.c.l.b16 %v317
    %v358 = vunpack.c.l.b16 %v318
    %v359 = vunpack.c.l.b16 %v319
    %v360 = vunpack.c.l.b16 %v320
    %v361 = vunpack.c.l.b16 %v321
    %v362 = vunpack.c.l.b16 %v322
    %v363 = vunpack.c.l.b16 %v323
    %v364 = vunpack.c.l.b16 %v324
    %v365 = vpack.c.b16 %v350, %v349
    %v366 = vpack.c.b16 %v352, %v351
    %v367 = vpack.c.b16 %v354, %v353
    %v368 = vpack.c.b16 %v356, %v355
    %v369 = vpack.c.b16 %v358, %v357
    %v370 = vpack.c.b16 %v360, %v359
    %v371 = vpack.c.b16 %v362, %v361
    %v372 = vpack.c.b16 %v364, %v363
    %381 = vmatprep.subr.bf16.mxu0 0
    %382 = vmatpush1.bf16.msra.mxu0 %v365
    %383 = vmatprep.subr.bf16.mxu0 0
    %384 = vmatpush1.bf16.msra.mxu0 %v366
    %385 = vmatprep.subr.bf16.mxu0 0
    %386 = vmatpush1.bf16.msra.mxu0 %v367
    %387 = vmatprep.subr.bf16.mxu0 0
    %388 = vmatpush1.bf16.msra.mxu0 %v368
    %389 = vmatprep.subr.bf16.mxu0 0
    %390 = vmatpush1.bf16.msra.mxu0 %v369
    %391 = vmatprep.subr.bf16.mxu0 0
    %392 = vmatpush1.bf16.msra.mxu0 %v370
    %393 = vmatprep.subr.bf16.mxu0 0
    %394 = vmatpush1.bf16.msra.mxu0 %v371
    %395 = vmatprep.subr.bf16.mxu0 0
    %396 = vmatpush1.bf16.msra.mxu0 %v372
    %397 = vmatprep.subr.bf16.mxu0 0
    %398 = vmatpush1.bf16.msra.mxu0 0
    %399 = vmatprep.subr.bf16.mxu0 0
    %400 = vmatpush1.bf16.msra.mxu0 0
    %401 = vmatprep.subr.bf16.mxu0 0
    %402 = vmatpush1.bf16.msra.mxu0 0
    %403 = vmatprep.subr.bf16.mxu0 0
    %404 = vmatpush1.bf16.msra.mxu0 0
    %405 = vmatprep.subr.bf16.mxu0 0
    %406 = vmatpush1.bf16.msra.mxu0 0
    %407 = vmatprep.subr.bf16.mxu0 0
    %408 = vmatpush1.bf16.msra.mxu0 0
    %409 = vmatprep.subr.bf16.mxu0 0
    %410 = vmatpush1.bf16.msra.mxu0 0
    %411 = vmatprep.subr.bf16.mxu0 0
    %412 = vmatpush1.bf16.msra.mxu0 0
    %413 = vmatprep.mubr.bf16.mxu0 0
    %414 = vmatmul.mubr.bf16.gmra.mrb[0].mxu0 %v307
    %v415 = vpop.f32.mrb[0].mxu0
    %v416 = vadd.f32 %v331, %v415
    %v417 = vpop.f32.mrb[0].mxu0
    %v418 = vpop.f32.mrb[0].mxu0
    %v419 = vpop.f32.mrb[0].mxu0
    %420 = vdwg.mxu0
    %v421 = vmax.f32 %v416, 0.0
    %v422 = vpack.c.bf16 %v421, %v421
    %s423 = scalar_lea.vmem [#allocation7], 128
    %v424 = vld [vmem:[%s423] sm:$0xf]
    %v425 = vld [vmem:[%s423 + $0x4] sm:$0xf]
    %v426 = vld [vmem:[%s423 + $0x8] sm:$0xf]
    %v427 = vld [vmem:[%s423 + $0xc] sm:$0xf]
    %v428 = vld [vmem:[%s423 + $0x10] sm:$0xf]
    %v429 = vld [vmem:[%s423 + $0x14] sm:$0xf]
    %v430 = vld [vmem:[%s423 + $0x18] sm:$0xf]
    %v431 = vld [vmem:[%s423 + $0x1c] sm:$0xf]
    %v432 = vld [vmem:[%s423 + $0x20] sm:$0xf]
    %v433 = vld [vmem:[%s423 + $0x24] sm:$0xf]
    %v434 = vld [vmem:[%s423 + $0x28] sm:$0xf]
    %v435 = vld [vmem:[%s423 + $0x2c] sm:$0xf]
    %v436 = vld [vmem:[%s423 + $0x30] sm:$0xf]
    %v437 = vld [vmem:[%s423 + $0x34] sm:$0xf]
    %v438 = vld [vmem:[%s423 + $0x38] sm:$0xf]
    %v439 = vld [vmem:[%s423 + $0x3c] sm:$0xf]
    %s440 = scalar_lea.vmem %s4, 2
    %v441 = vld [vmem:[%s440] sm:$0x1]
    %v443 = vlaneseq
    %v444 = vshrl.u32 %v443, 7
    %v445 = vsub.s32 0, %v444
    %v446 = vrot.slane %v441, %v445
    %v464 = vunpack.c.l.b16 %v424
    %v465 = vunpack.c.l.b16 %v425
    %v466 = vunpack.c.l.b16 %v426
    %v467 = vunpack.c.l.b16 %v427
    %v468 = vunpack.c.l.b16 %v428
    %v469 = vunpack.c.l.b16 %v429
    %v470 = vunpack.c.l.b16 %v430
    %v471 = vunpack.c.l.b16 %v431
    %v472 = vunpack.c.l.b16 %v432
    %v473 = vunpack.c.l.b16 %v433
    %v474 = vunpack.c.l.b16 %v434
    %v475 = vunpack.c.l.b16 %v435
    %v476 = vunpack.c.l.b16 %v436
    %v477 = vunpack.c.l.b16 %v437
    %v478 = vunpack.c.l.b16 %v438
    %v479 = vunpack.c.l.b16 %v439
    %v480 = vpack.c.b16 %v465, %v464
    %v481 = vpack.c.b16 %v467, %v466
    %v482 = vpack.c.b16 %v469, %v468
    %v483 = vpack.c.b16 %v471, %v470
    %v484 = vpack.c.b16 %v473, %v472
    %v485 = vpack.c.b16 %v475, %v474
    %v486 = vpack.c.b16 %v477, %v476
    %v487 = vpack.c.b16 %v479, %v478
    %496 = vmatprep.subr.bf16.mxu0 0
    %497 = vmatpush1.bf16.msra.mxu0 %v480
    %498 = vmatprep.subr.bf16.mxu0 0
    %499 = vmatpush1.bf16.msra.mxu0 %v481
    %500 = vmatprep.subr.bf16.mxu0 0
    %501 = vmatpush1.bf16.msra.mxu0 %v482
    %502 = vmatprep.subr.bf16.mxu0 0
    %503 = vmatpush1.bf16.msra.mxu0 %v483
    %504 = vmatprep.subr.bf16.mxu0 0
    %505 = vmatpush1.bf16.msra.mxu0 %v484
    %506 = vmatprep.subr.bf16.mxu0 0
    %507 = vmatpush1.bf16.msra.mxu0 %v485
    %508 = vmatprep.subr.bf16.mxu0 0
    %509 = vmatpush1.bf16.msra.mxu0 %v486
    %510 = vmatprep.subr.bf16.mxu0 0
    %511 = vmatpush1.bf16.msra.mxu0 %v487
    %512 = vmatprep.subr.bf16.mxu0 0
    %513 = vmatpush1.bf16.msra.mxu0 0
    %514 = vmatprep.subr.bf16.mxu0 0
    %515 = vmatpush1.bf16.msra.mxu0 0
    %516 = vmatprep.subr.bf16.mxu0 0
    %517 = vmatpush1.bf16.msra.mxu0 0
    %518 = vmatprep.subr.bf16.mxu0 0
    %519 = vmatpush1.bf16.msra.mxu0 0
    %520 = vmatprep.subr.bf16.mxu0 0
    %521 = vmatpush1.bf16.msra.mxu0 0
    %522 = vmatprep.subr.bf16.mxu0 0
    %523 = vmatpush1.bf16.msra.mxu0 0
    %524 = vmatprep.subr.bf16.mxu0 0
    %525 = vmatpush1.bf16.msra.mxu0 0
    %526 = vmatprep.subr.bf16.mxu0 0
    %527 = vmatpush1.bf16.msra.mxu0 0
    %528 = vmatprep.mubr.bf16.mxu0 0
    %529 = vmatmul.mubr.bf16.gmra.mrb[0].mxu0 %v422
    %v530 = vpop.f32.mrb[0].mxu0
    %v531 = vadd.f32 %v446, %v530
    %v532 = vpop.f32.mrb[0].mxu0
    %v533 = vpop.f32.mrb[0].mxu0
    %v534 = vpop.f32.mrb[0].mxu0
    %535 = vdwg.mxu0
    %v536 = vxor.u32 %v531, 2147483648
    %v537 = vmul.f32 %v536, 1.442695
    %v538 = vpow.pop %v537
    %v539 = vadd.f32 %v538, 1.0
    %v540 = vrcp.pop %v539
    %v541 = vmul.f32 1.0, %v540
    %v542 = vpack.c.bf16 %v541, %v541
    %v543 = vld [vmem:[#allocation8] sm:$0xf]
    %v544 = vld [vmem:[#allocation8 + $0x4] sm:$0xf]
    %v545 = vld [vmem:[#allocation8 + $0x8] sm:$0xf]
    %v546 = vld [vmem:[#allocation8 + $0xc] sm:$0xf]
    %v547 = vld [vmem:[#allocation8 + $0x10] sm:$0xf]
    %v548 = vld [vmem:[#allocation8 + $0x14] sm:$0xf]
    %v549 = vld [vmem:[#allocation8 + $0x18] sm:$0xf]
    %v550 = vld [vmem:[#allocation8 + $0x1c] sm:$0xf]
    %v551 = vld [vmem:[#allocation8 + $0x20] sm:$0xf]
    %v552 = vld [vmem:[#allocation8 + $0x24] sm:$0xf]
    %v553 = vld [vmem:[#allocation8 + $0x28] sm:$0xf]
    %v554 = vld [vmem:[#allocation8 + $0x2c] sm:$0xf]
    %v555 = vld [vmem:[#allocation8 + $0x30] sm:$0xf]
    %v556 = vld [vmem:[#allocation8 + $0x34] sm:$0xf]
    %v557 = vld [vmem:[#allocation8 + $0x38] sm:$0xf]
    %v558 = vld [vmem:[#allocation8 + $0x3c] sm:$0xf]
    %v559 = vld [vmem:[%s6] sm:$0x1]
    %v561 = vlaneseq
    %v562 = vshrl.u32 %v561, 7
    %v563 = vsub.s32 0, %v562
    %v564 = vrot.slane %v559, %v563
    %v582 = vunpack.c.l.b16 %v543
    %v583 = vunpack.c.l.b16 %v544
    %v584 = vunpack.c.l.b16 %v545
    %v585 = vunpack.c.l.b16 %v546
    %v586 = vunpack.c.l.b16 %v547
    %v587 = vunpack.c.l.b16 %v548
    %v588 = vunpack.c.l.b16 %v549
    %v589 = vunpack.c.l.b16 %v550
    %v590 = vunpack.c.l.b16 %v551
    %v591 = vunpack.c.l.b16 %v552
    %v592 = vunpack.c.l.b16 %v553
    %v593 = vunpack.c.l.b16 %v554
    %v594 = vunpack.c.l.b16 %v555
    %v595 = vunpack.c.l.b16 %v556
    %v596 = vunpack.c.l.b16 %v557
    %v597 = vunpack.c.l.b16 %v558
    %v598 = vpack.c.b16 %v583, %v582
    %v599 = vpack.c.b16 %v585, %v584
    %v600 = vpack.c.b16 %v587, %v586
    %v601 = vpack.c.b16 %v589, %v588
    %v602 = vpack.c.b16 %v591, %v590
    %v603 = vpack.c.b16 %v593, %v592
    %v604 = vpack.c.b16 %v595, %v594
    %v605 = vpack.c.b16 %v597, %v596
    %614 = vmatprep.subr.bf16.mxu0 0
    %615 = vmatpush1.bf16.msra.mxu0 %v598
    %616 = vmatprep.subr.bf16.mxu0 0
    %617 = vmatpush1.bf16.msra.mxu0 %v599
    %618 = vmatprep.subr.bf16.mxu0 0
    %619 = vmatpush1.bf16.msra.mxu0 %v600
    %620 = vmatprep.subr.bf16.mxu0 0
    %621 = vmatpush1.bf16.msra.mxu0 %v601
    %622 = vmatprep.subr.bf16.mxu0 0
    %623 = vmatpush1.bf16.msra.mxu0 %v602
    %624 = vmatprep.subr.bf16.mxu0 0
    %625 = vmatpush1.bf16.msra.mxu0 %v603
    %626 = vmatprep.subr.bf16.mxu0 0
    %627 = vmatpush1.bf16.msra.mxu0 %v604
    %628 = vmatprep.subr.bf16.mxu0 0
    %629 = vmatpush1.bf16.msra.mxu0 %v605
    %630 = vmatprep.subr.bf16.mxu0 0
    %631 = vmatpush1.bf16.msra.mxu0 0
    %632 = vmatprep.subr.bf16.mxu0 0
    %633 = vmatpush1.bf16.msra.mxu0 0
    %634 = vmatprep.subr.bf16.mxu0 0
    %635 = vmatpush1.bf16.msra.mxu0 0
    %636 = vmatprep.subr.bf16.mxu0 0
    %637 = vmatpush1.bf16.msra.mxu0 0
    %638 = vmatprep.subr.bf16.mxu0 0
    %639 = vmatpush1.bf16.msra.mxu0 0
    %640 = vmatprep.subr.bf16.mxu0 0
    %641 = vmatpush1.bf16.msra.mxu0 0
    %642 = vmatprep.subr.bf16.mxu0 0
    %643 = vmatpush1.bf16.msra.mxu0 0
    %644 = vmatprep.subr.bf16.mxu0 0
    %645 = vmatpush1.bf16.msra.mxu0 0
    %646 = vmatprep.mubr.bf16.mxu0 0
    %647 = vmatmul.mubr.bf16.gmra.mrb[0].mxu0 %v542
    %v648 = vpop.f32.mrb[0].mxu0
    %v649 = vadd.f32 %v564, %v648
    %v650 = vpop.f32.mrb[0].mxu0
    %v651 = vpop.f32.mrb[0].mxu0
    %v652 = vpop.f32.mrb[0].mxu0
    %653 = vdwg.mxu0
    %654 = vst [vmem:[#allocation10] sm:$0xff] %v649
    // Predicated region
    $region46: #{tpu_custom_call.1} parent=1 // pred_check
      _
    $region47: #{tpu_custom_call.1} parent=1 // pred_check_branch
      %656 = sbr.rel (0) target = $region49
    $region48: #{tpu_custom_call.1} parent=1 // pred_region
      %s658 = ssub.s32 128, 128
      %659 = vsyncadd [#allocation4], %s658
      %s661 = sshll.u32 [#allocation10], 4
      %s662 = int_to_ptr.vmem [resolvable:$true] %s661
      %664 = dma.vmem_to_hbm [thread:$0]  %s662, 128, %s7, [#allocation4]
    $region49: #{tpu_custom_call.1} parent=1 // pred_fallthru
      _
    // Predicated region
    $region50: #{tpu_custom_call.1} parent=1 // pred_check
      _
    $region51: #{tpu_custom_call.1} parent=1 // pred_check_branch
      %666 = sbr.rel (0) target = $region53
    $region52: #{tpu_custom_call.1} parent=1 // pred_region
      %667 = dma.done [#allocation4], 128
    $region53: #{tpu_custom_call.1} parent=1 // pred_fallthru
      _
    %668 = vsyncpa [#allocation3], 1
    %669 = vsyncpa [#allocation6], 1
    %670 = vsyncpa [#allocation9], 1
    %671 = vsyncpa [#allocation4], 1

</llo_original>
